<compile_context>
chip_gen: v7x
topology: tpu7x:2x2x1
jax: 0.10.0
libtpu: 0.0.40
codegen_flags: <defaults>
</compile_context>

<pallas_src>
import jax
import jax.numpy as jnp
from jax.experimental import pallas as pl
from jax.experimental.pallas import tpu as pltpu


def _mosaic_params():
    # Batch grid axis is fully independent -> shard across TensorCores on v7x.
    # Harmless (single core, sequential grid) on v5e / v6e.
    return pltpu.CompilerParams(dimension_semantics=("parallel",))


def _bcast_spec(shape):
    """BlockSpec for a weight/scale tensor identical for every grid step."""
    zeros = (0,) * len(shape)
    return pl.BlockSpec(shape, lambda n: zeros)


def _ds(start, size, stride):
    """pl.ds helper: plain slice for stride 1, strided slice otherwise."""
    return pl.ds(start, size) if stride == 1 else pl.ds(start, size, stride)


def _zero_border(pad_ref, H, W):
    """Zero ONLY the 1-pixel border of the (H+2, W+2, C) pad scratch.

    Done every grid step (not once under pl.when(pid==0)) because the batch axis
    is "parallel": on a 2-core chip the second core's private scratch would never
    execute the pid==0 iteration. Border-only zeroing is still far cheaper than
    the previous full-scratch fill; the interior is overwritten right after.
    """
    C = pad_ref.shape[-1]
    dt = pad_ref.dtype
    pad_ref[pl.ds(0, 1), :, :] = jnp.zeros((1, W + 2, C), dt)
    pad_ref[pl.ds(H + 1, 1), :, :] = jnp.zeros((1, W + 2, C), dt)
    pad_ref[pl.ds(1, H), pl.ds(0, 1), :] = jnp.zeros((H, 1, C), dt)
    pad_ref[pl.ds(1, H), pl.ds(W + 1, 1), :] = jnp.zeros((H, 1, C), dt)


# ----------------------------------------------------------------------------
# Pallas kernels
# ----------------------------------------------------------------------------
def _preconv_kernel(x_ref, w_ref, s_ref, b_ref, o_ref, pad_ref, col_ref):
    """Fused 3x3 conv (stride 1, pad 1) + folded BN + ReLU6 for one image.

    Taps are packed into one aligned im2col VMEM buffer -> a single MXU dot
    with K = 9*Cin (instead of 9 tiny-K dots).
    """
    _, H, W, Cin = x_ref.shape
    Cout = o_ref.shape[-1]

    _zero_border(pad_ref, H, W)
    pad_ref[pl.ds(1, H), pl.ds(1, W), :] = x_ref[0].astype(pad_ref.dtype)

    # im2col: (H*W, 9*Cin) bf16 buffer, lane-aligned writes per tap.
    for k in range(9):
        kh, kw = divmod(k, 3)
        tap = pad_ref[pl.ds(kh, H), pl.ds(kw, W), :]          # (H, W, Cin) f32
        col_ref[:, pl.ds(k * Cin, Cin)] = tap.reshape(H * W, Cin).astype(col_ref.dtype)

    y = jnp.dot(col_ref[...], w_ref[...], preferred_element_type=jnp.float32)
    y = jnp.clip(y * s_ref[...] + b_ref[...], 0.0, 6.0)
    o_ref[0] = y.reshape(H, W, Cout).astype(o_ref.dtype)


def _block_body(x_ref, exp_refs, wd_ref, sd_ref, bd_ref, wp_ref, sp_ref, bp_ref,
                post_refs, o_ref, pad_ref, *, use_res, stride):
    """Fused inverted-residual block for one image:
    expand 1x1 -> depthwise 3x3 (strided) -> project 1x1 -> (+res) -> (optional fused post 1x1).
    All intermediates stay in VMEM; only the final (Ho, Wo, Cfinal) tile hits HBM.
    """
    _, H, W, Cin = x_ref.shape
    Cexp = pad_ref.shape[-1]
    Cfinal = o_ref.shape[-1]
    Ho = (H - 1) // stride + 1
    Wo = (W - 1) // stride + 1

    x3 = x_ref[0].astype(jnp.float32)                         # (H, W, Cin)
    xf = x3.reshape(H * W, Cin) if (exp_refs is not None or use_res) else None

    # --- expansion 1x1 conv + BN + ReLU6 (Identity when exp_ratio == 1) ---
    if exp_refs is not None:
        we_ref, se_ref, be_ref = exp_refs
        e = jnp.dot(xf.astype(jnp.bfloat16), we_ref[...],     # bf16 x bf16 -> f32 acc
                    preferred_element_type=jnp.float32)       # (H*W, Cexp)
        e3 = jnp.clip(e * se_ref[...] + be_ref[...], 0.0, 6.0).reshape(H, W, Cexp)
    else:
        e3 = x3                                               # Cexp == Cin

    # --- zero-padded expanded activation, kept entirely in VMEM ---
    _zero_border(pad_ref, H, W)
    pad_ref[pl.ds(1, H), pl.ds(1, W), :] = e3

    # --- depthwise 3x3 + BN + ReLU6, evaluated ONLY at the strided output positions ---
    wd = wd_ref[...].astype(jnp.float32)                      # (9, 1, Cexp), loaded once
    acc = jnp.zeros((Ho, Wo, Cexp), jnp.float32)
    for k in range(9):
        kh, kw = divmod(k, 3)
        acc = acc + pad_ref[_ds(kh, Ho, stride), _ds(kw, Wo, stride), :] * wd[k]
    d = jnp.clip(acc * sd_ref[...] + bd_ref[...], 0.0, 6.0)

    # --- pointwise projection 1x1 + BN (no activation) + optional residual add ---
    p = jnp.dot(d.reshape(Ho * Wo, Cexp).astype(jnp.bfloat16), wp_ref[...],
                preferred_element_type=jnp.float32)           # (Ho*Wo, Cout)
    p = p * sp_ref[...] + bp_ref[...]
    if use_res:
        p = p + xf                                            # stride==1 and Cin==Cout

    # --- fused MobileNetBase post 1x1 ConvBlock (only for the last block) ---
    if post_refs is not None:
        wq_ref, sq_ref, bq_ref = post_refs
        q = jnp.dot(p.astype(jnp.bfloat16), wq_ref[...],
                    preferred_element_type=jnp.float32)       # (Ho*Wo, Cpost)
        out = jnp.clip(q * sq_ref[...] + bq_ref[...], 0.0, 6.0)
    else:
        out = p

    o_ref[0] = out.reshape(Ho, Wo, Cfinal).astype(o_ref.dtype)


def _make_block_kernel(has_exp, use_res, has_post, stride):
    def kernel(*refs):
        i = 0
        x_ref = refs[i]; i += 1
        exp_refs = None
        if has_exp:
            exp_refs = refs[i:i + 3]; i += 3
        wd_ref, sd_ref, bd_ref = refs[i:i + 3]; i += 3
        wp_ref, sp_ref, bp_ref = refs[i:i + 3]; i += 3
        post_refs = None
        if has_post:
            post_refs = refs[i:i + 3]; i += 3
        o_ref, pad_ref = refs[i], refs[i + 1]
        _block_body(x_ref, exp_refs, wd_ref, sd_ref, bd_ref, wp_ref, sp_ref, bp_ref,
                    post_refs, o_ref, pad_ref, use_res=use_res, stride=stride)
    return kernel


# ----------------------------------------------------------------------------
# Pallas wrappers
# ----------------------------------------------------------------------------
def preconv3x3(x, w, scale, bias):
    N, H, W, Cin = x.shape
    Cout = w.shape[-1]
    w2 = w.reshape(9 * Cin, Cout).astype(jnp.bfloat16)        # matches im2col (k, ci) order
    flops = 2 * N * H * W * 9 * Cin * Cout
    bytes_accessed = 4 * N * H * W * (Cin + Cout) + 2 * 9 * Cin * Cout + 8 * Cout
    return pl.pallas_call(
        _preconv_kernel,
        out_shape=jax.ShapeDtypeStruct((N, H, W, Cout), x.dtype),
        grid=(N,),
        in_specs=[
            pl.BlockSpec((1, H, W, Cin), lambda n: (n, 0, 0, 0)),
            _bcast_spec((9 * Cin, Cout)),
            _bcast_spec((1, Cout)),
            _bcast_spec((1, Cout)),
        ],
        out_specs=pl.BlockSpec((1, H, W, Cout), lambda n: (n, 0, 0, 0)),
        scratch_shapes=[
            pltpu.VMEM((H + 2, W + 2, Cin), jnp.float32),      # padded input
            pltpu.VMEM((H * W, 9 * Cin), jnp.bfloat16),        # im2col buffer
        ],
        compiler_params=_mosaic_params(),
        cost_estimate=pl.CostEstimate(flops=flops, transcendentals=0,
                                      bytes_accessed=int(bytes_accessed)),
    )(x, w2, scale, bias)


def bottleneck_block(x, bp, stride, exp_ratio, post=None):
    N, H, W, Cin = x.shape
    has_exp = exp_ratio > 1
    wd, sd, bd = bp["dw"]
    Cexp = wd.shape[-1]
    wp, sp, bpw = bp["pw"]
    Cout = wp.shape[-1]
    use_res = (stride == 1 and Cin == Cout)
    has_post = post is not None
    Ho = (H - 1) // stride + 1
    Wo = (W - 1) // stride + 1
    Cfinal = Cout

    args = [x]
    in_specs = [pl.BlockSpec((1, H, W, Cin), lambda n: (n, 0, 0, 0))]
    flops = 18 * N * Ho * Wo * Cexp                            # depthwise MAC
    if has_exp:
        we, se, be = bp["exp"]
        args += [we.reshape(Cin, Cexp).astype(jnp.bfloat16), se, be]
        in_specs += [_bcast_spec((Cin, Cexp)), _bcast_spec((1, Cexp)), _bcast_spec((1, Cexp))]
        flops += 2 * N * H * W * Cin * Cexp
    args += [wd.reshape(9, 1, Cexp), sd, bd,
             wp.reshape(Cexp, Cout).astype(jnp.bfloat16), sp, bpw]
    in_specs += [_bcast_spec((9, 1, Cexp)), _bcast_spec((1, Cexp)), _bcast_spec((1, Cexp)),
                 _bcast_spec((Cexp, Cout)), _bcast_spec((1, Cout)), _bcast_spec((1, Cout))]
    flops += 2 * N * Ho * Wo * Cexp * Cout
    if has_post:
        wq, sq, bq = post
        Cpost = wq.shape[-1]
        args += [wq.reshape(Cout, Cpost).astype(jnp.bfloat16), sq, bq]
        in_specs += [_bcast_spec((Cout, Cpost)), _bcast_spec((1, Cpost)), _bcast_spec((1, Cpost))]
        flops += 2 * N * Ho * Wo * Cout * Cpost
        Cfinal = Cpost

    bytes_accessed = 4 * N * (H * W * Cin + Ho * Wo * Cfinal)
    for a in args[1:]:
        bytes_accessed += a.size * a.dtype.itemsize

    return pl.pallas_call(
        _make_block_kernel(has_exp, use_res, has_post, stride),
        out_shape=jax.ShapeDtypeStruct((N, Ho, Wo, Cfinal), x.dtype),
        grid=(N,),
        in_specs=in_specs,
        out_specs=pl.BlockSpec((1, Ho, Wo, Cfinal), lambda n: (n, 0, 0, 0)),
        scratch_shapes=[pltpu.VMEM((H + 2, W + 2, Cexp), jnp.float32)],
        compiler_params=_mosaic_params(),
        cost_estimate=pl.CostEstimate(flops=int(flops), transcendentals=0,
                                      bytes_accessed=int(bytes_accessed)),
    )(*args)


# ----------------------------------------------------------------------------
# Parameter init (deterministic, BN folded into scale/bias)
# ----------------------------------------------------------------------------
def _init_conv(key, kh, kw, cin, cout):
    k1, k2, k3 = jax.random.split(key, 3)
    fan_in = kh * kw * cin
    w = jax.random.normal(k1, (kh, kw, cin, cout), jnp.float32) / jnp.sqrt(float(fan_in))
    gamma = 1.0 + 0.1 * jax.random.normal(k2, (cout,), jnp.float32)
    beta = 0.1 * jax.random.normal(k3, (cout,), jnp.float32)
    scale = (gamma / jnp.sqrt(1.0 + 1e-5)).reshape(1, cout)    # BN fold (mean=0, var=1)
    bias = beta.reshape(1, cout)
    return w, scale, bias


def _init_dw(key, c):
    k1, k2, k3 = jax.random.split(key, 3)
    w = jax.random.normal(k1, (3, 3, c), jnp.float32) / 3.0
    gamma = 1.0 + 0.1 * jax.random.normal(k2, (c,), jnp.float32)
    beta = 0.1 * jax.random.normal(k3, (c,), jnp.float32)
    scale = (gamma / jnp.sqrt(1.0 + 1e-5)).reshape(1, c)
    bias = beta.reshape(1, c)
    return w, scale, bias


def init_mobilenet(key, blocks_depths, exp_ratios, preconv_depth, in_channels):
    keys = jax.random.split(key, 2 + 3 * len(blocks_depths))
    ki = iter(keys)
    params = {"preconv": _init_conv(next(ki), 3, 3, in_channels, preconv_depth)}
    n_in = [preconv_depth] + blocks_depths[:-1]
    blocks = []
    for cin, cout, er in zip(n_in, blocks_depths, exp_ratios):
        cexp = int(cin * er)
        bp = {}
        if er > 1:
            bp["exp"] = _init_conv(next(ki), 1, 1, cin, cexp)
        else:
            _ = next(ki)
        bp["dw"] = _init_dw(next(ki), cexp)
        bp["pw"] = _init_conv(next(ki), 1, 1, cexp, cout)
        blocks.append(bp)
    params["blocks"] = blocks
    params["post"] = _init_conv(next(ki), 1, 1, blocks_depths[-1], 4 * blocks_depths[-1])
    return params


# ----------------------------------------------------------------------------
# Forward pass (Pallas) and pure-JAX reference
# ----------------------------------------------------------------------------
def mobilenet_forward(x_nchw, params, blocks_strides, exp_ratios):
    x = jnp.transpose(x_nchw, (0, 2, 3, 1))  # NCHW -> NHWC
    w, s, b = params["preconv"]
    z = preconv3x3(x, w, s, b)
    n_blocks = len(params["blocks"])
    assert n_blocks >= 1
    for i, bp in enumerate(params["blocks"]):
        post = params["post"] if i == n_blocks - 1 else None   # fuse post conv into last block
        # Dropout2d: identity in eval mode.
        z = bottleneck_block(z, bp, blocks_strides[i], exp_ratios[i], post=post)
    return jnp.transpose(z, (0, 3, 1, 2))  # NHWC -> NCHW


def _ref_conv(x, w, scale, bias, *, stride, pad, relu6, groups=1):
    y = jax.lax.conv_general_dilated(
        x, w, window_strides=(stride, stride), padding=[(pad, pad), (pad, pad)],
        dimension_numbers=("NHWC", "HWIO", "NHWC"), feature_group_count=groups)
    y = y * scale.reshape(1, 1, 1, -1) + bias.reshape(1, 1, 1, -1)
    if relu6:
        y = jnp.clip(y, 0.0, 6.0)
    return y


def mobilenet_reference(x_nchw, params, blocks_strides, exp_ratios):
    x = jnp.transpose(x_nchw, (0, 2, 3, 1))
    w, s, b = params["preconv"]
    z = _ref_conv(x, w, s, b, stride=1, pad=1, relu6=True)
    for i, bp in enumerate(params["blocks"]):
        stride = blocks_strides[i]
        inp = z
        cin = z.shape[-1]
        if exp_ratios[i] > 1:
            we, se, be = bp["exp"]
            z = _ref_conv(z, we, se, be, stride=1, pad=0, relu6=True)
        wd, sd, bd = bp["dw"]
        c = wd.shape[-1]
        z = _ref_conv(z, wd.reshape(3, 3, 1, c), sd, bd, stride=stride, pad=1,
                      relu6=True, groups=c)
        wp, sp, bpw = bp["pw"]
        cout = wp.shape[-1]
        z = _ref_conv(z, wp, sp, bpw, stride=1, pad=0, relu6=False)
        if stride == 1 and cin == cout:
            z = inp + z
    w, s, b = params["post"]
    z = _ref_conv(z, w, s, b, stride=1, pad=0, relu6=True)
    return jnp.transpose(z, (0, 3, 1, 2))


# ----------------------------------------------------------------------------
if __name__ == "__main__":
    # Small MobileNetBase config.
    blocks_depths = [8, 16]
    blocks_strides = [1, 2]
    exp_ratios = [1, 4]
    preconv_depth = 8
    in_channels = 1

    key = jax.random.PRNGKey(0)
    kp, kx = jax.random.split(key)
    params = init_mobilenet(kp, blocks_depths, exp_ratios, preconv_depth, in_channels)

    x = jax.random.normal(kx, (2, in_channels, 16, 16), jnp.float32)  # NCHW like PyTorch

    out = mobilenet_forward(x, params, blocks_strides, exp_ratios)
    out = jax.block_until_ready(out)

    ref = jax.block_until_ready(mobilenet_reference(x, params, blocks_strides, exp_ratios))

    assert out.shape == (2, 4 * blocks_depths[-1], 8, 8), out.shape
    assert bool(jnp.all(jnp.isfinite(out)))
    # Tolerance accounts for bf16 MXU operand rounding (f32 reference); real bugs give O(1) errors.
    max_err = float(jnp.max(jnp.abs(out - ref)))
    assert max_err < 0.2, f"mismatch vs reference: {max_err}"

    print("KERNEL_OK")
</pallas_src>

<mosaic_0001>
module attributes {stable_mosaic.version = 11 : i64} {
  func.func @_preconv_kernel(%arg0: i32, %arg1: memref<1x16x16x1xf32, #tpu.memory_space<vmem>>, %arg2: memref<9x8xbf16, #tpu.memory_space<vmem>>, %arg3: memref<1x8xf32, #tpu.memory_space<vmem>>, %arg4: memref<1x8xf32, #tpu.memory_space<vmem>>, %arg5: memref<1x16x16x8xf32, #tpu.memory_space<vmem>>, %arg6: memref<18x18x1xf32, #tpu.memory_space<vmem>>, %arg7: memref<256x9xbf16, #tpu.memory_space<vmem>>) attributes {dimension_semantics = [#tpu.dimension_semantics<parallel>], iteration_bounds = array<i64: 2>, scalar_prefetch = 0 : i64, scratch_operands = 2 : i64, tpu.core_type = #tpu.core_type<tc>, window_params = [{transform_indices = @transform_0, window_bounds = array<i64: 1, 16, 16, 1>}, {pipeline_mode = #tpu.pipeline_mode<synchronous>, transform_indices = @transform_1, window_bounds = array<i64: 9, 8>}, {pipeline_mode = #tpu.pipeline_mode<synchronous>, transform_indices = @transform_2, window_bounds = array<i64: 1, 8>}, {pipeline_mode = #tpu.pipeline_mode<synchronous>, transform_indices = @transform_3, window_bounds = array<i64: 1, 8>}, {transform_indices = @transform_4, window_bounds = array<i64: 1, 16, 16, 8>}]} {
    %cst = arith.constant 0.000000e+00 : f32
    %0 = vector.broadcast %cst : f32 to vector<1x18x1xf32>
    %c0 = arith.constant 0 : index
    %c0_0 = arith.constant 0 : index
    %c0_1 = arith.constant 0 : index
    %1 = vector.load %arg6[%c0, %c0_0, %c0_1] : memref<18x18x1xf32, #tpu.memory_space<vmem>>, vector<1x18x1xf32>
    tpu.vector_store %arg6[%c0, %c0_0, %c0_1], %0 {strides = array<i32>} : memref<18x18x1xf32, #tpu.memory_space<vmem>>, vector<1x18x1xf32>,
    %cst_2 = arith.constant 0.000000e+00 : f32
    %2 = vector.broadcast %cst_2 : f32 to vector<1x18x1xf32>
    %c17 = arith.constant 17 : index
    %c0_3 = arith.constant 0 : index
    %c0_4 = arith.constant 0 : index
    %3 = vector.load %arg6[%c17, %c0_3, %c0_4] : memref<18x18x1xf32, #tpu.memory_space<vmem>>, vector<1x18x1xf32>
    tpu.vector_store %arg6[%c17, %c0_3, %c0_4], %2 {strides = array<i32>} : memref<18x18x1xf32, #tpu.memory_space<vmem>>, vector<1x18x1xf32>,
    %cst_5 = arith.constant 0.000000e+00 : f32
    %4 = vector.broadcast %cst_5 : f32 to vector<16x1x1xf32>
    %c1 = arith.constant 1 : index
    %c0_6 = arith.constant 0 : index
    %c0_7 = arith.constant 0 : index
    %5 = vector.load %arg6[%c1, %c0_6, %c0_7] : memref<18x18x1xf32, #tpu.memory_space<vmem>>, vector<16x1x1xf32>
    tpu.vector_store %arg6[%c1, %c0_6, %c0_7], %4 {strides = array<i32>} : memref<18x18x1xf32, #tpu.memory_space<vmem>>, vector<16x1x1xf32>,
    %cst_8 = arith.constant 0.000000e+00 : f32
    %6 = vector.broadcast %cst_8 : f32 to vector<16x1x1xf32>
    %c1_9 = arith.constant 1 : index
    %c17_10 = arith.constant 17 : index
    %c0_11 = arith.constant 0 : index
    %7 = vector.load %arg6[%c1_9, %c17_10, %c0_11] : memref<18x18x1xf32, #tpu.memory_space<vmem>>, vector<16x1x1xf32>
    tpu.vector_store %arg6[%c1_9, %c17_10, %c0_11], %6 {strides = array<i32>} : memref<18x18x1xf32, #tpu.memory_space<vmem>>, vector<16x1x1xf32>,
    %c0_12 = arith.constant 0 : index
    %c0_13 = arith.constant 0 : index
    %c0_14 = arith.constant 0 : index
    %c0_15 = arith.constant 0 : index
    %8 = vector.load %arg1[%c0_12, %c0_13, %c0_14, %c0_15] : memref<1x16x16x1xf32, #tpu.memory_space<vmem>>, vector<1x16x16x1xf32>
    %9 = vector.shape_cast %8 : vector<1x16x16x1xf32> to vector<16x16x1xf32>
    %c1_16 = arith.constant 1 : index
    %c1_17 = arith.constant 1 : index
    %c0_18 = arith.constant 0 : index
    %10 = vector.load %arg6[%c1_16, %c1_17, %c0_18] : memref<18x18x1xf32, #tpu.memory_space<vmem>>, vector<16x16x1xf32>
    tpu.vector_store %arg6[%c1_16, %c1_17, %c0_18], %9 {strides = array<i32>} : memref<18x18x1xf32, #tpu.memory_space<vmem>>, vector<16x16x1xf32>,
    %c0_19 = arith.constant 0 : index
    %c0_20 = arith.constant 0 : index
    %c0_21 = arith.constant 0 : index
    %11 = vector.load %arg6[%c0_19, %c0_20, %c0_21] : memref<18x18x1xf32, #tpu.memory_space<vmem>>, vector<16x16x1xf32>
    %12 = vector.shape_cast %11 : vector<16x16x1xf32> to vector<256x1xf32>
    %13 = arith.truncf %12 : vector<256x1xf32> to vector<256x1xbf16>
    %c0_22 = arith.constant 0 : index
    %c0_23 = arith.constant 0 : index
    %14 = vector.load %arg7[%c0_22, %c0_23] : memref<256x9xbf16, #tpu.memory_space<vmem>>, vector<256x1xbf16>
    tpu.vector_store %arg7[%c0_22, %c0_23], %13 {strides = array<i32>} : memref<256x9xbf16, #tpu.memory_space<vmem>>, vector<256x1xbf16>,
    %c0_24 = arith.constant 0 : index
    %c1_25 = arith.constant 1 : index
    %c0_26 = arith.constant 0 : index
    %15 = vector.load %arg6[%c0_24, %c1_25, %c0_26] : memref<18x18x1xf32, #tpu.memory_space<vmem>>, vector<16x16x1xf32>
    %16 = vector.shape_cast %15 : vector<16x16x1xf32> to vector<256x1xf32>
    %17 = arith.truncf %16 : vector<256x1xf32> to vector<256x1xbf16>
    %c0_27 = arith.constant 0 : index
    %c1_28 = arith.constant 1 : index
    %18 = vector.load %arg7[%c0_27, %c1_28] : memref<256x9xbf16, #tpu.memory_space<vmem>>, vector<256x1xbf16>
    tpu.vector_store %arg7[%c0_27, %c1_28], %17 {strides = array<i32>} : memref<256x9xbf16, #tpu.memory_space<vmem>>, vector<256x1xbf16>,
    %c0_29 = arith.constant 0 : index
    %c2 = arith.constant 2 : index
    %c0_30 = arith.constant 0 : index
    %19 = vector.load %arg6[%c0_29, %c2, %c0_30] : memref<18x18x1xf32, #tpu.memory_space<vmem>>, vector<16x16x1xf32>
    %20 = vector.shape_cast %19 : vector<16x16x1xf32> to vector<256x1xf32>
    %21 = arith.truncf %20 : vector<256x1xf32> to vector<256x1xbf16>
    %c0_31 = arith.constant 0 : index
    %c2_32 = arith.constant 2 : index
    %22 = vector.load %arg7[%c0_31, %c2_32] : memref<256x9xbf16, #tpu.memory_space<vmem>>, vector<256x1xbf16>
    tpu.vector_store %arg7[%c0_31, %c2_32], %21 {strides = array<i32>} : memref<256x9xbf16, #tpu.memory_space<vmem>>, vector<256x1xbf16>,
    %c1_33 = arith.constant 1 : index
    %c0_34 = arith.constant 0 : index
    %c0_35 = arith.constant 0 : index
    %23 = vector.load %arg6[%c1_33, %c0_34, %c0_35] : memref<18x18x1xf32, #tpu.memory_space<vmem>>, vector<16x16x1xf32>
    %24 = vector.shape_cast %23 : vector<16x16x1xf32> to vector<256x1xf32>
    %25 = arith.truncf %24 : vector<256x1xf32> to vector<256x1xbf16>
    %c0_36 = arith.constant 0 : index
    %c3 = arith.constant 3 : index
    %26 = vector.load %arg7[%c0_36, %c3] : memref<256x9xbf16, #tpu.memory_space<vmem>>, vector<256x1xbf16>
    tpu.vector_store %arg7[%c0_36, %c3], %25 {strides = array<i32>} : memref<256x9xbf16, #tpu.memory_space<vmem>>, vector<256x1xbf16>,
    %c1_37 = arith.constant 1 : index
    %c1_38 = arith.constant 1 : index
    %c0_39 = arith.constant 0 : index
    %27 = vector.load %arg6[%c1_37, %c1_38, %c0_39] : memref<18x18x1xf32, #tpu.memory_space<vmem>>, vector<16x16x1xf32>
    %28 = vector.shape_cast %27 : vector<16x16x1xf32> to vector<256x1xf32>
    %29 = arith.truncf %28 : vector<256x1xf32> to vector<256x1xbf16>
    %c0_40 = arith.constant 0 : index
    %c4 = arith.constant 4 : index
    %30 = vector.load %arg7[%c0_40, %c4] : memref<256x9xbf16, #tpu.memory_space<vmem>>, vector<256x1xbf16>
    tpu.vector_store %arg7[%c0_40, %c4], %29 {strides = array<i32>} : memref<256x9xbf16, #tpu.memory_space<vmem>>, vector<256x1xbf16>,
    %c1_41 = arith.constant 1 : index
    %c2_42 = arith.constant 2 : index
    %c0_43 = arith.constant 0 : index
    %31 = vector.load %arg6[%c1_41, %c2_42, %c0_43] : memref<18x18x1xf32, #tpu.memory_space<vmem>>, vector<16x16x1xf32>
    %32 = vector.shape_cast %31 : vector<16x16x1xf32> to vector<256x1xf32>
    %33 = arith.truncf %32 : vector<256x1xf32> to vector<256x1xbf16>
    %c0_44 = arith.constant 0 : index
    %c5 = arith.constant 5 : index
    %34 = vector.load %arg7[%c0_44, %c5] : memref<256x9xbf16, #tpu.memory_space<vmem>>, vector<256x1xbf16>
    tpu.vector_store %arg7[%c0_44, %c5], %33 {strides = array<i32>} : memref<256x9xbf16, #tpu.memory_space<vmem>>, vector<256x1xbf16>,
    %c2_45 = arith.constant 2 : index
    %c0_46 = arith.constant 0 : index
    %c0_47 = arith.constant 0 : index
    %35 = vector.load %arg6[%c2_45, %c0_46, %c0_47] : memref<18x18x1xf32, #tpu.memory_space<vmem>>, vector<16x16x1xf32>
    %36 = vector.shape_cast %35 : vector<16x16x1xf32> to vector<256x1xf32>
    %37 = arith.truncf %36 : vector<256x1xf32> to vector<256x1xbf16>
    %c0_48 = arith.constant 0 : index
    %c6 = arith.constant 6 : index
    %38 = vector.load %arg7[%c0_48, %c6] : memref<256x9xbf16, #tpu.memory_space<vmem>>, vector<256x1xbf16>
    tpu.vector_store %arg7[%c0_48, %c6], %37 {strides = array<i32>} : memref<256x9xbf16, #tpu.memory_space<vmem>>, vector<256x1xbf16>,
    %c2_49 = arith.constant 2 : index
    %c1_50 = arith.constant 1 : index
    %c0_51 = arith.constant 0 : index
    %39 = vector.load %arg6[%c2_49, %c1_50, %c0_51] : memref<18x18x1xf32, #tpu.memory_space<vmem>>, vector<16x16x1xf32>
    %40 = vector.shape_cast %39 : vector<16x16x1xf32> to vector<256x1xf32>
    %41 = arith.truncf %40 : vector<256x1xf32> to vector<256x1xbf16>
    %c0_52 = arith.constant 0 : index
    %c7 = arith.constant 7 : index
    %42 = vector.load %arg7[%c0_52, %c7] : memref<256x9xbf16, #tpu.memory_space<vmem>>, vector<256x1xbf16>
    tpu.vector_store %arg7[%c0_52, %c7], %41 {strides = array<i32>} : memref<256x9xbf16, #tpu.memory_space<vmem>>, vector<256x1xbf16>,
    %c2_53 = arith.constant 2 : index
    %c2_54 = arith.constant 2 : index
    %c0_55 = arith.constant 0 : index
    %43 = vector.load %arg6[%c2_53, %c2_54, %c0_55] : memref<18x18x1xf32, #tpu.memory_space<vmem>>, vector<16x16x1xf32>
    %44 = vector.shape_cast %43 : vector<16x16x1xf32> to vector<256x1xf32>
    %45 = arith.truncf %44 : vector<256x1xf32> to vector<256x1xbf16>
    %c0_56 = arith.constant 0 : index
    %c8 = arith.constant 8 : index
    %46 = vector.load %arg7[%c0_56, %c8] : memref<256x9xbf16, #tpu.memory_space<vmem>>, vector<256x1xbf16>
    tpu.vector_store %arg7[%c0_56, %c8], %45 {strides = array<i32>} : memref<256x9xbf16, #tpu.memory_space<vmem>>, vector<256x1xbf16>,
    %c0_57 = arith.constant 0 : index
    %c0_58 = arith.constant 0 : index
    %47 = vector.load %arg7[%c0_57, %c0_58] : memref<256x9xbf16, #tpu.memory_space<vmem>>, vector<256x9xbf16>
    %c0_59 = arith.constant 0 : index
    %c0_60 = arith.constant 0 : index
    %48 = vector.load %arg2[%c0_59, %c0_60] : memref<9x8xbf16, #tpu.memory_space<vmem>>, vector<9x8xbf16>
    %cst_61 = arith.constant dense<0.000000e+00> : vector<256x8xf32>
    %49 = tpu.matmul %47, %48, %cst_61 {dimension_numbers = #tpu.dot_dimension_numbers<[1], [0], [0], [1], [0, 0, 1, 1], [], []>} : vector<256x9xbf16>, vector<9x8xbf16>, vector<256x8xf32> -> vector<256x8xf32>
    %c0_62 = arith.constant 0 : index
    %c0_63 = arith.constant 0 : index
    %50 = vector.load %arg3[%c0_62, %c0_63] : memref<1x8xf32, #tpu.memory_space<vmem>>, vector<1x8xf32>
    %51 = vector.broadcast %50 : vector<1x8xf32> to vector<256x8xf32>
    %52 = arith.mulf %49, %51 : vector<256x8xf32>
    %c0_64 = arith.constant 0 : index
    %c0_65 = arith.constant 0 : index
    %53 = vector.load %arg4[%c0_64, %c0_65] : memref<1x8xf32, #tpu.memory_space<vmem>>, vector<1x8xf32>
    %54 = vector.broadcast %53 : vector<1x8xf32> to vector<256x8xf32>
    %55 = arith.addf %52, %54 : vector<256x8xf32>
    %cst_66 = arith.constant 0.000000e+00 : f32
    %cst_67 = arith.constant 6.000000e+00 : f32
    %56 = vector.broadcast %cst_66 : f32 to vector<256x8xf32>
    %57 = arith.maximumf %56, %55 : vector<256x8xf32>
    %58 = vector.broadcast %cst_67 : f32 to vector<256x8xf32>
    %59 = arith.minimumf %58, %57 : vector<256x8xf32>
    %60 = vector.shape_cast %59 : vector<256x8xf32> to vector<16x16x8xf32>
    %c0_68 = arith.constant 0 : index
    %c0_69 = arith.constant 0 : index
    %c0_70 = arith.constant 0 : index
    %c0_71 = arith.constant 0 : index
    %61 = vector.load %arg5[%c0_68, %c0_69, %c0_70, %c0_71] : memref<1x16x16x8xf32, #tpu.memory_space<vmem>>, vector<1x16x16x8xf32>
    %62 = vector.shape_cast %61 : vector<1x16x16x8xf32> to vector<16x16x8xf32>
    %63 = vector.shape_cast %60 : vector<16x16x8xf32> to vector<1x16x16x8xf32>
    tpu.vector_store %arg5[%c0_68, %c0_69, %c0_70, %c0_71], %63 {strides = array<i32>} : memref<1x16x16x8xf32, #tpu.memory_space<vmem>>, vector<1x16x16x8xf32>,
    return
  }
  func.func @transform_0(%arg0: i32) -> (i32, i32, i32, i32) {
    %c0_i32 = arith.constant 0 : i32
    %c0_i32_0 = arith.constant 0 : i32
    %c0_i32_1 = arith.constant 0 : i32
    %c0_i32_2 = arith.constant 0 : i32
    return %arg0, %c0_i32, %c0_i32_0, %c0_i32_1 : i32, i32, i32, i32
  }
  func.func @transform_1(%arg0: i32) -> (i32, i32) {
    %c0_i32 = arith.constant 0 : i32
    %c0_i32_0 = arith.constant 0 : i32
    %c0_i32_1 = arith.constant 0 : i32
    return %c0_i32, %c0_i32_0 : i32, i32
  }
  func.func @transform_2(%arg0: i32) -> (i32, i32) {
    %c0_i32 = arith.constant 0 : i32
    %c0_i32_0 = arith.constant 0 : i32
    %c0_i32_1 = arith.constant 0 : i32
    return %c0_i32, %c0_i32_0 : i32, i32
  }
  func.func @transform_3(%arg0: i32) -> (i32, i32) {
    %c0_i32 = arith.constant 0 : i32
    %c0_i32_0 = arith.constant 0 : i32
    %c0_i32_1 = arith.constant 0 : i32
    return %c0_i32, %c0_i32_0 : i32, i32
  }
  func.func @transform_4(%arg0: i32) -> (i32, i32, i32, i32) {
    %c0_i32 = arith.constant 0 : i32
    %c0_i32_0 = arith.constant 0 : i32
    %c0_i32_1 = arith.constant 0 : i32
    %c0_i32_2 = arith.constant 0 : i32
    return %arg0, %c0_i32, %c0_i32_0, %c0_i32_1 : i32, i32, i32, i32
  }
}

</mosaic_0001>

<llo_original>
// kernel: tpu_custom_call.1
$region0: #{tpu_custom_call.1}
  #allocation0 [shape = 'u32[]', space=smem, size = 0x4, offset = 0x4, fixed_abs, tag = 'smem constant byte address 0x4 - core index']
  #allocation1 [shape = 'u32[144,128]{1,0:T(1,128)}', space=vmem, size = 0x12000, scoped, tag = 'internal scratch']
  #allocation2 [shape = 'f32[18,18,1]{2,1,0:T(8,128)}', space=vmem, size = 0x36000, scoped, tag = 'scratch operand']
  #allocation3 [shape = 'bf16[256,9]{1,0:T(16,128)(2,1)}', space=vmem, size = 0x10000, scoped, tag = 'scratch operand']
  %s0 = inlined_call_operand.vmem [shape: f32[2,16,16,1], index: 0, kind: input, shape index: {}]
  %s1 = inlined_call_operand.vmem [shape: bf16[9,8], index: 1, kind: input, shape index: {}]
  %s2 = inlined_call_operand.vmem [shape: f32[1,8], index: 2, kind: input, shape index: {}]
  %s3 = inlined_call_operand.vmem [shape: f32[1,8], index: 3, kind: input, shape index: {}]
  %s4 = inlined_call_operand.vmem [shape: f32[2,16,16,8], index: 4, kind: output, shape index: {}]
  %s5 = sld [smem:[#allocation0]]
  $region49: #{tpu_custom_call.1} parent=0
    _
  %s7 = ssub.s32 1, %s5
  %s8 = scalar_select 0, %s7, %s5
  loop: start=0, step=1, limit=4
  $region2: #{tpu_custom_call.1} parent=0 // loop_pre_header
    _
  $region3: #{tpu_custom_call.1} parent=0 // loop_header
    %s10 = sphi 0, %s14
    %p11 = scmp.ge.s32.totalorder %s10, 4
    %s20 = sphi 0, %s22
    %s23 = sphi 0, %s20
    %s24 = sphi 0, %s23
    %s40 = sphi 0, %s24
    %s44 = sphi 0, %s44
    %s46 = sphi 0, %s44
    %s47 = sphi 0, %s46
    %s61 = sphi 0, %s47
    %s65 = sphi 0, %s65
    %s67 = sphi 0, %s65
    %s68 = sphi 0, %s67
    %s82 = sphi 0, %s68
    %s86 = sphi 0, %s86
    %s88 = sphi 0, %s86
    %s89 = sphi 0, %s88
    %s103 = sphi 0, %s89
    %s109 = sphi 0, %s111
    %s112 = sphi 0, %s109
    %s113 = sphi 0, %s112
    %s129 = sphi 0, %s113
  $region4: #{tpu_custom_call.1} parent=0 // loop_header_branch
    %13 = sbr.rel (%p11) target = $region8
  $region5: #{tpu_custom_call.1} parent=0 // loop_body
    %s15 = ssub.s32 %s10, 1
    %s16 = ssub.s32 %s10, 2
    %s17 = sadd.s32 %s10, 1
    %s18 = ssub.s32 %s10, %s17
    %p19 = scmp.eq.s32.totalorder %s18, 0
    %s21 = sadd.s32 %s20, 1
    %s22 = scalar_select %p19, %s20, %s21
    %p25 = pneg %p19
    %p26 = scmp.eq.s32.totalorder %s10, 1
    %p27 = por %p25, %p26
    %p28 = scmp.ne.s32.totalorder %s20, %s23
    %p29 = scmp.eq.s32.totalorder %s10, 0
    %p30 = por %p28, %p29
    %p31 = scmp.ne.s32.totalorder %s20, %s23
    %p32 = scmp.eq.s32.totalorder %s15, 1
    %p33 = por %p31, %p32
    %p34 = scmp.ne.s32.totalorder %s23, %s24
    %p35 = scmp.eq.s32.totalorder %s15, 0
    %p36 = por %p34, %p35
    %p37 = scmp.ne.s32.totalorder %s23, %s24
    %p38 = scmp.eq.s32.totalorder %s16, 1
    %p39 = por %p37, %p38
    %p41 = scmp.ne.s32.totalorder %s24, %s40
    %p42 = scmp.eq.s32.totalorder %s16, 0
    %p43 = por %p41, %p42
    %s45 = sadd.s32 %s44, 1
    %p48 = scmp.eq.s32.totalorder %s10, 1
    %p49 = scmp.ne.s32.totalorder %s44, %s46
    %p50 = scmp.eq.s32.totalorder %s10, 0
    %p51 = por %p49, %p50
    %p52 = scmp.ne.s32.totalorder %s44, %s46
    %p53 = scmp.eq.s32.totalorder %s15, 1
    %p54 = por %p52, %p53
    %p55 = scmp.ne.s32.totalorder %s46, %s47
    %p56 = scmp.eq.s32.totalorder %s15, 0
    %p57 = por %p55, %p56
    %p58 = scmp.ne.s32.totalorder %s46, %s47
    %p59 = scmp.eq.s32.totalorder %s16, 1
    %p60 = por %p58, %p59
    %p62 = scmp.ne.s32.totalorder %s47, %s61
    %p63 = scmp.eq.s32.totalorder %s16, 0
    %p64 = por %p62, %p63
    %s66 = sadd.s32 %s65, 1
    %p69 = scmp.eq.s32.totalorder %s10, 1
    %p70 = scmp.ne.s32.totalorder %s65, %s67
    %p71 = scmp.eq.s32.totalorder %s10, 0
    %p72 = por %p70, %p71
    %p73 = scmp.ne.s32.totalorder %s65, %s67
    %p74 = scmp.eq.s32.totalorder %s15, 1
    %p75 = por %p73, %p74
    %p76 = scmp.ne.s32.totalorder %s67, %s68
    %p77 = scmp.eq.s32.totalorder %s15, 0
    %p78 = por %p76, %p77
    %p79 = scmp.ne.s32.totalorder %s67, %s68
    %p80 = scmp.eq.s32.totalorder %s16, 1
    %p81 = por %p79, %p80
    %p83 = scmp.ne.s32.totalorder %s68, %s82
    %p84 = scmp.eq.s32.totalorder %s16, 0
    %p85 = por %p83, %p84
    %s87 = sadd.s32 %s86, 1
    %p90 = scmp.eq.s32.totalorder %s10, 1
    %p91 = scmp.ne.s32.totalorder %s86, %s88
    %p92 = scmp.eq.s32.totalorder %s10, 0
    %p93 = por %p91, %p92
    %p94 = scmp.ne.s32.totalorder %s86, %s88
    %p95 = scmp.eq.s32.totalorder %s15, 1
    %p96 = por %p94, %p95
    %p97 = scmp.ne.s32.totalorder %s88, %s89
    %p98 = scmp.eq.s32.totalorder %s15, 0
    %p99 = por %p97, %p98
    %p100 = scmp.ne.s32.totalorder %s88, %s89
    %p101 = scmp.eq.s32.totalorder %s16, 1
    %p102 = por %p100, %p101
    %p104 = scmp.ne.s32.totalorder %s89, %s103
    %p105 = scmp.eq.s32.totalorder %s16, 0
    %p106 = por %p104, %p105
    %s107 = ssub.s32 %s10, %s17
    %p108 = scmp.eq.s32.totalorder %s107, 0
    %s110 = sadd.s32 %s109, 1
    %s111 = scalar_select %p108, %s109, %s110
    %p114 = pneg %p108
    %p115 = scmp.eq.s32.totalorder %s10, 1
    %p116 = por %p114, %p115
    %p117 = scmp.ne.s32.totalorder %s109, %s112
    %p118 = scmp.eq.s32.totalorder %s10, 0
    %p119 = por %p117, %p118
    %p120 = scmp.ne.s32.totalorder %s109, %s112
    %p121 = scmp.eq.s32.totalorder %s15, 1
    %p122 = por %p120, %p121
    %p123 = scmp.ne.s32.totalorder %s112, %s113
    %p124 = scmp.eq.s32.totalorder %s15, 0
    %p125 = por %p123, %p124
    %p126 = scmp.ne.s32.totalorder %s112, %s113
    %p127 = scmp.eq.s32.totalorder %s16, 1
    %p128 = por %p126, %p127
    %p130 = scmp.ne.s32.totalorder %s113, %s129
    %p131 = scmp.eq.s32.totalorder %s16, 0
    %p132 = por %p130, %p131
    %p133 = scmp.le.s32.totalorder 1, %s10
    %p134 = scmp.lt.s32.totalorder %s10, 3
    %p135 = pnand %p133, %p134
    %p136 = pneg %p135
    // Predicated region
    $region9: #{tpu_custom_call.1} parent=5 // pred_check
      _
    $region10: #{tpu_custom_call.1} parent=5 // pred_check_branch
      %138 = sbr.rel (%p135) target = $region12
    $region11: #{tpu_custom_call.1} parent=5 // pred_region
      %s139 = ssub.s32 %s10, 1
      // Predicated region
      $region13: #{tpu_custom_call.1} parent=11 // pred_check
        %p140 = pneg %p57
      $region14: #{tpu_custom_call.1} parent=11 // pred_check_branch
        %142 = sbr.rel (%p140) target = $region16
      $region15: #{tpu_custom_call.1} parent=11 // pred_region
        _
      $region16: #{tpu_custom_call.1} parent=11 // pred_fallthru
        _
      // Predicated region
      $region17: #{tpu_custom_call.1} parent=11 // pred_check
        %p143 = pneg %p78
      $region18: #{tpu_custom_call.1} parent=11 // pred_check_branch
        %145 = sbr.rel (%p143) target = $region20
      $region19: #{tpu_custom_call.1} parent=11 // pred_region
        _
      $region20: #{tpu_custom_call.1} parent=11 // pred_fallthru
        _
      // Predicated region
      $region21: #{tpu_custom_call.1} parent=11 // pred_check
        %p146 = pneg %p99
      $region22: #{tpu_custom_call.1} parent=11 // pred_check_branch
        %148 = sbr.rel (%p146) target = $region24
      $region23: #{tpu_custom_call.1} parent=11 // pred_region
        _
      $region24: #{tpu_custom_call.1} parent=11 // pred_fallthru
        _
    $region12: #{tpu_custom_call.1} parent=5 // pred_fallthru
      _
    %p149 = scmp.lt.s32.totalorder %s10, 2
    // Predicated region
    $region25: #{tpu_custom_call.1} parent=5 // pred_check
      %p150 = pneg %p149
    $region26: #{tpu_custom_call.1} parent=5 // pred_check_branch
      %152 = sbr.rel (%p150) target = $region28
    $region27: #{tpu_custom_call.1} parent=5 // pred_region
      // Predicated region
      $region29: #{tpu_custom_call.1} parent=27 // pred_check
        %p153 = pneg %p30
      $region30: #{tpu_custom_call.1} parent=27 // pred_check_branch
        %155 = sbr.rel (%p153) target = $region32
      $region31: #{tpu_custom_call.1} parent=27 // pred_region
        %p156 = scmp.lt.s32.totalorder %s10, 1
        %s157 = scalar_select %p156, %s10, 1
        %s158 = smul.addr %s157, 32
        %s159 = smul.addr %s158, 8
        %s160 = scalar_lea.vmem %s0, %s159
      $region32: #{tpu_custom_call.1} parent=27 // pred_fallthru
        _
    $region28: #{tpu_custom_call.1} parent=5 // pred_fallthru
      _
    %p161 = scmp.le.s32.totalorder 1, %s10
    %p162 = scmp.lt.s32.totalorder %s10, 3
    %p163 = pnand %p161, %p162
    %p164 = pneg %p163
    // Predicated region
    $region33: #{tpu_custom_call.1} parent=5 // pred_check
      _
    $region34: #{tpu_custom_call.1} parent=5 // pred_check_branch
      %166 = sbr.rel (%p163) target = $region36
    $region35: #{tpu_custom_call.1} parent=5 // pred_region
      %s167 = ssub.s32 %s10, 1
      %p168 = scmp.lt.s32.totalorder %s15, 1
      %s169 = scalar_select %p168, %s15, 1
      %s170 = smul.addr %s169, 32
      %s171 = smul.addr %s170, 8
      %s172 = scalar_lea.vmem %s0, %s171
      %p173 = pneg %p36
      %p174 = pneg %p33
      %p175 = pneg %p57
      %p176 = pneg %p54
      %p177 = pneg %p78
      %p178 = pneg %p75
      %p179 = pneg %p99
      %p180 = pneg %p96
      %p181 = pneg %p125
      %p182 = pneg %p122
      %p183 = scmp.lt.s32.totalorder %s15, 1
      %s184 = scalar_select %p183, %s15, 1
      %s185 = smul.addr %s184, 32
      %s186 = smul.addr %s185, 8
      %s187 = scalar_lea.vmem %s4, %s186
      %p188 = scmp.lt.s32.totalorder %s15, 1
      %s189 = scalar_select %p188, %s15, 1
      %s190 = smul.addr %s189, 32
      %s191 = smul.addr %s190, 8
      %s192 = scalar_lea.vmem %s0, %s191
      %p193 = scmp.lt.s32.totalorder %s15, 1
      %s194 = scalar_select %p193, %s15, 1
      %s195 = smul.addr %s194, 32
      %s196 = smul.addr %s195, 8
      %s197 = scalar_lea.vmem %s4, %s196
      %vm199 = vcmask 7168
      %200 = vst.msk [vmem:[#allocation2] sm:$0xff] %vm199, 0.0
      %201 = vst.msk [vmem:[#allocation2 + $0x8] sm:$0xff] %vm199, 0.0
      %vm202 = vcmask 1024
      %203 = vst.msk [vmem:[#allocation2 + $0x10] sm:$0x3] %vm202, 0.0
      %s204 = scalar_lea.vmem [#allocation2], 408
      %205 = vst.msk [vmem:[%s204] sm:$0xff] %vm199, 0.0
      %206 = vst.msk [vmem:[%s204 + $0x8] sm:$0xff] %vm199, 0.0
      %207 = vst.msk [vmem:[%s204 + $0x10] sm:$0x3] %vm202, 0.0
      %s208 = scalar_lea.vmem [#allocation2], 24
      %vm209 = vcmask 0
      %210 = vst.msk [vmem:[%s208] sm:$0x1] %vm209, 0.0
      %211 = vst.msk [vmem:[%s208 + $0x18] sm:$0x1] %vm209, 0.0
      %212 = vst.msk [vmem:[%s208 + $0x30] sm:$0x1] %vm209, 0.0
      %213 = vst.msk [vmem:[%s208 + $0x48] sm:$0x1] %vm209, 0.0
      %214 = vst.msk [vmem:[%s208 + $0x60] sm:$0x1] %vm209, 0.0
      %215 = vst.msk [vmem:[%s208 + $0x78] sm:$0x1] %vm209, 0.0
      %216 = vst.msk [vmem:[%s208 + $0x90] sm:$0x1] %vm209, 0.0
      %217 = vst.msk [vmem:[%s208 + $0xa8] sm:$0x1] %vm209, 0.0
      %218 = vst.msk [vmem:[%s208 + $0xc0] sm:$0x1] %vm209, 0.0
      %219 = vst.msk [vmem:[%s208 + $0xd8] sm:$0x1] %vm209, 0.0
      %220 = vst.msk [vmem:[%s208 + $0xf0] sm:$0x1] %vm209, 0.0
      %221 = vst.msk [vmem:[%s208 + $0x108] sm:$0x1] %vm209, 0.0
      %222 = vst.msk [vmem:[%s208 + $0x120] sm:$0x1] %vm209, 0.0
      %223 = vst.msk [vmem:[%s208 + $0x138] sm:$0x1] %vm209, 0.0
      %224 = vst.msk [vmem:[%s208 + $0x150] sm:$0x1] %vm209, 0.0
      %225 = vst.msk [vmem:[%s208 + $0x168] sm:$0x1] %vm209, 0.0
      %226 = vst.msk [vmem:[%s208 + $0x11] sm:$0x1] %vm209, 0.0
      %227 = vst.msk [vmem:[%s208 + $0x29] sm:$0x1] %vm209, 0.0
      %228 = vst.msk [vmem:[%s208 + $0x41] sm:$0x1] %vm209, 0.0
      %229 = vst.msk [vmem:[%s208 + $0x59] sm:$0x1] %vm209, 0.0
      %230 = vst.msk [vmem:[%s208 + $0x71] sm:$0x1] %vm209, 0.0
      %231 = vst.msk [vmem:[%s208 + $0x89] sm:$0x1] %vm209, 0.0
      %232 = vst.msk [vmem:[%s208 + $0xa1] sm:$0x1] %vm209, 0.0
      %233 = vst.msk [vmem:[%s208 + $0xb9] sm:$0x1] %vm209, 0.0
      %234 = vst.msk [vmem:[%s208 + $0xd1] sm:$0x1] %vm209, 0.0
      %235 = vst.msk [vmem:[%s208 + $0xe9] sm:$0x1] %vm209, 0.0
      %236 = vst.msk [vmem:[%s208 + $0x101] sm:$0x1] %vm209, 0.0
      %237 = vst.msk [vmem:[%s208 + $0x119] sm:$0x1] %vm209, 0.0
      %238 = vst.msk [vmem:[%s208 + $0x131] sm:$0x1] %vm209, 0.0
      %239 = vst.msk [vmem:[%s208 + $0x149] sm:$0x1] %vm209, 0.0
      %240 = vst.msk [vmem:[%s208 + $0x161] sm:$0x1] %vm209, 0.0
      %241 = vst.msk [vmem:[%s208 + $0x179] sm:$0x1] %vm209, 0.0
      %v242 = vld [vmem:[%s192] sm:$0xff]
      %v243 = vld [vmem:[%s192 + $0x8] sm:$0xff]
      %v244 = vld [vmem:[%s192 + $0x10] sm:$0xff]
      %v245 = vld [vmem:[%s192 + $0x18] sm:$0xff]
      %v246 = vld [vmem:[%s192 + $0x20] sm:$0xff]
      %v247 = vld [vmem:[%s192 + $0x28] sm:$0xff]
      %v248 = vld [vmem:[%s192 + $0x30] sm:$0xff]
      %v249 = vld [vmem:[%s192 + $0x38] sm:$0xff]
      %v250 = vld [vmem:[%s192 + $0x40] sm:$0xff]
      %v251 = vld [vmem:[%s192 + $0x48] sm:$0xff]
      %v252 = vld [vmem:[%s192 + $0x50] sm:$0xff]
      %v253 = vld [vmem:[%s192 + $0x58] sm:$0xff]
      %v254 = vld [vmem:[%s192 + $0x60] sm:$0xff]
      %v255 = vld [vmem:[%s192 + $0x68] sm:$0xff]
      %v256 = vld [vmem:[%s192 + $0x70] sm:$0xff]
      %v257 = vld [vmem:[%s192 + $0x78] sm:$0xff]
      %v258 = vld [vmem:[%s192 + $0x80] sm:$0xff]
      %v259 = vld [vmem:[%s192 + $0x88] sm:$0xff]
      %v260 = vld [vmem:[%s192 + $0x90] sm:$0xff]
      %v261 = vld [vmem:[%s192 + $0x98] sm:$0xff]
      %v262 = vld [vmem:[%s192 + $0xa0] sm:$0xff]
      %v263 = vld [vmem:[%s192 + $0xa8] sm:$0xff]
      %v264 = vld [vmem:[%s192 + $0xb0] sm:$0xff]
      %v265 = vld [vmem:[%s192 + $0xb8] sm:$0xff]
      %v266 = vld [vmem:[%s192 + $0xc0] sm:$0xff]
      %v267 = vld [vmem:[%s192 + $0xc8] sm:$0xff]
      %v268 = vld [vmem:[%s192 + $0xd0] sm:$0xff]
      %v269 = vld [vmem:[%s192 + $0xd8] sm:$0xff]
      %v270 = vld [vmem:[%s192 + $0xe0] sm:$0xff]
      %v271 = vld [vmem:[%s192 + $0xe8] sm:$0xff]
      %v272 = vld [vmem:[%s192 + $0xf0] sm:$0xff]
      %v273 = vld [vmem:[%s192 + $0xf8] sm:$0xff]
      %274 = vst.msk [vmem:[%s208 + $0x1] sm:$0xff] %vm199, %v242
      %275 = vst.msk [vmem:[%s208 + $0x9] sm:$0xff] %vm199, %v243
      %276 = vst.msk [vmem:[%s208 + $0x19] sm:$0xff] %vm199, %v244
      %277 = vst.msk [vmem:[%s208 + $0x21] sm:$0xff] %vm199, %v245
      %278 = vst.msk [vmem:[%s208 + $0x31] sm:$0xff] %vm199, %v246
      %279 = vst.msk [vmem:[%s208 + $0x39] sm:$0xff] %vm199, %v247
      %280 = vst.msk [vmem:[%s208 + $0x49] sm:$0xff] %vm199, %v248
      %281 = vst.msk [vmem:[%s208 + $0x51] sm:$0xff] %vm199, %v249
      %282 = vst.msk [vmem:[%s208 + $0x61] sm:$0xff] %vm199, %v250
      %283 = vst.msk [vmem:[%s208 + $0x69] sm:$0xff] %vm199, %v251
      %284 = vst.msk [vmem:[%s208 + $0x79] sm:$0xff] %vm199, %v252
      %285 = vst.msk [vmem:[%s208 + $0x81] sm:$0xff] %vm199, %v253
      %286 = vst.msk [vmem:[%s208 + $0x91] sm:$0xff] %vm199, %v254
      %287 = vst.msk [vmem:[%s208 + $0x99] sm:$0xff] %vm199, %v255
      %288 = vst.msk [vmem:[%s208 + $0xa9] sm:$0xff] %vm199, %v256
      %289 = vst.msk [vmem:[%s208 + $0xb1] sm:$0xff] %vm199, %v257
      %290 = vst.msk [vmem:[%s208 + $0xc1] sm:$0xff] %vm199, %v258
      %291 = vst.msk [vmem:[%s208 + $0xc9] sm:$0xff] %vm199, %v259
      %292 = vst.msk [vmem:[%s208 + $0xd9] sm:$0xff] %vm199, %v260
      %293 = vst.msk [vmem:[%s208 + $0xe1] sm:$0xff] %vm199, %v261
      %294 = vst.msk [vmem:[%s208 + $0xf1] sm:$0xff] %vm199, %v262
      %295 = vst.msk [vmem:[%s208 + $0xf9] sm:$0xff] %vm199, %v263
      %296 = vst.msk [vmem:[%s208 + $0x109] sm:$0xff] %vm199, %v264
      %297 = vst.msk [vmem:[%s208 + $0x111] sm:$0xff] %vm199, %v265
      %298 = vst.msk [vmem:[%s208 + $0x121] sm:$0xff] %vm199, %v266
      %299 = vst.msk [vmem:[%s208 + $0x129] sm:$0xff] %vm199, %v267
      %300 = vst.msk [vmem:[%s208 + $0x139] sm:$0xff] %vm199, %v268
      %301 = vst.msk [vmem:[%s208 + $0x141] sm:$0xff] %vm199, %v269
      %302 = vst.msk [vmem:[%s208 + $0x151] sm:$0xff] %vm199, %v270
      %303 = vst.msk [vmem:[%s208 + $0x159] sm:$0xff] %vm199, %v271
      %304 = vst.msk [vmem:[%s208 + $0x169] sm:$0xff] %vm199, %v272
      %305 = vst.msk [vmem:[%s208 + $0x171] sm:$0xff] %vm199, %v273
      %v306 = vld [vmem:[#allocation2] sm:$0xff]
      %v307 = vld [vmem:[#allocation2 + $0x8] sm:$0xff]
      %v308 = vld [vmem:[#allocation2 + $0x18] sm:$0xff]
      %v309 = vld [vmem:[#allocation2 + $0x20] sm:$0xff]
      %v310 = vld [vmem:[#allocation2 + $0x30] sm:$0xff]
      %v311 = vld [vmem:[#allocation2 + $0x38] sm:$0xff]
      %v312 = vld [vmem:[#allocation2 + $0x48] sm:$0xff]
      %v313 = vld [vmem:[#allocation2 + $0x50] sm:$0xff]
      %v314 = vld [vmem:[#allocation2 + $0x60] sm:$0xff]
      %v315 = vld [vmem:[#allocation2 + $0x68] sm:$0xff]
      %v316 = vld [vmem:[#allocation2 + $0x78] sm:$0xff]
      %v317 = vld [vmem:[#allocation2 + $0x80] sm:$0xff]
      %v318 = vld [vmem:[#allocation2 + $0x90] sm:$0xff]
      %v319 = vld [vmem:[#allocation2 + $0x98] sm:$0xff]
      %v320 = vld [vmem:[#allocation2 + $0xa8] sm:$0xff]
      %v321 = vld [vmem:[#allocation2 + $0xb0] sm:$0xff]
      %v322 = vld [vmem:[#allocation2 + $0xc0] sm:$0xff]
      %v323 = vld [vmem:[#allocation2 + $0xc8] sm:$0xff]
      %v324 = vld [vmem:[#allocation2 + $0xd8] sm:$0xff]
      %v325 = vld [vmem:[#allocation2 + $0xe0] sm:$0xff]
      %v326 = vld [vmem:[#allocation2 + $0xf0] sm:$0xff]
      %v327 = vld [vmem:[#allocation2 + $0xf8] sm:$0xff]
      %v328 = vld [vmem:[#allocation2 + $0x108] sm:$0xff]
      %v329 = vld [vmem:[#allocation2 + $0x110] sm:$0xff]
      %v330 = vld [vmem:[#allocation2 + $0x120] sm:$0xff]
      %v331 = vld [vmem:[#allocation2 + $0x128] sm:$0xff]
      %v332 = vld [vmem:[#allocation2 + $0x138] sm:$0xff]
      %v333 = vld [vmem:[#allocation2 + $0x140] sm:$0xff]
      %v334 = vld [vmem:[#allocation2 + $0x150] sm:$0xff]
      %v335 = vld [vmem:[#allocation2 + $0x158] sm:$0xff]
      %v336 = vld [vmem:[#allocation2 + $0x168] sm:$0xff]
      %v337 = vld [vmem:[#allocation2 + $0x170] sm:$0xff]
      %v338 = vpack.c.bf16 %v307, %v306
      %v339 = vpack.c.bf16 %v309, %v308
      %v340 = vpack.c.bf16 %v311, %v310
      %v341 = vpack.c.bf16 %v313, %v312
      %v342 = vpack.c.bf16 %v315, %v314
      %v343 = vpack.c.bf16 %v317, %v316
      %v344 = vpack.c.bf16 %v319, %v318
      %v345 = vpack.c.bf16 %v321, %v320
      %v346 = vpack.c.bf16 %v323, %v322
      %v347 = vpack.c.bf16 %v325, %v324
      %v348 = vpack.c.bf16 %v327, %v326
      %v349 = vpack.c.bf16 %v329, %v328
      %v350 = vpack.c.bf16 %v331, %v330
      %v351 = vpack.c.bf16 %v333, %v332
      %v352 = vpack.c.bf16 %v335, %v334
      %v353 = vpack.c.bf16 %v337, %v336
      %354 = vst.msk [vmem:[#allocation3] sm:$0xff] %vm199, %v338
      %355 = vst.msk [vmem:[#allocation3 + $0x8] sm:$0xff] %vm199, %v339
      %356 = vst.msk [vmem:[#allocation3 + $0x10] sm:$0xff] %vm199, %v340
      %357 = vst.msk [vmem:[#allocation3 + $0x18] sm:$0xff] %vm199, %v341
      %358 = vst.msk [vmem:[#allocation3 + $0x20] sm:$0xff] %vm199, %v342
      %359 = vst.msk [vmem:[#allocation3 + $0x28] sm:$0xff] %vm199, %v343
      %360 = vst.msk [vmem:[#allocation3 + $0x30] sm:$0xff] %vm199, %v344
      %361 = vst.msk [vmem:[#allocation3 + $0x38] sm:$0xff] %vm199, %v345
      %362 = vst.msk [vmem:[#allocation3 + $0x40] sm:$0xff] %vm199, %v346
      %363 = vst.msk [vmem:[#allocation3 + $0x48] sm:$0xff] %vm199, %v347
      %364 = vst.msk [vmem:[#allocation3 + $0x50] sm:$0xff] %vm199, %v348
      %365 = vst.msk [vmem:[#allocation3 + $0x58] sm:$0xff] %vm199, %v349
      %366 = vst.msk [vmem:[#allocation3 + $0x60] sm:$0xff] %vm199, %v350
      %367 = vst.msk [vmem:[#allocation3 + $0x68] sm:$0xff] %vm199, %v351
      %368 = vst.msk [vmem:[#allocation3 + $0x70] sm:$0xff] %vm199, %v352
      %369 = vst.msk [vmem:[#allocation3 + $0x78] sm:$0xff] %vm199, %v353
      %v370 = vld [vmem:[#allocation2 + $0x1] sm:$0xff]
      %v371 = vld [vmem:[#allocation2 + $0x9] sm:$0xff]
      %v372 = vld [vmem:[#allocation2 + $0x19] sm:$0xff]
      %v373 = vld [vmem:[#allocation2 + $0x21] sm:$0xff]
      %v374 = vld [vmem:[#allocation2 + $0x31] sm:$0xff]
      %v375 = vld [vmem:[#allocation2 + $0x39] sm:$0xff]
      %v376 = vld [vmem:[#allocation2 + $0x49] sm:$0xff]
      %v377 = vld [vmem:[#allocation2 + $0x51] sm:$0xff]
      %v378 = vld [vmem:[#allocation2 + $0x61] sm:$0xff]
      %v379 = vld [vmem:[#allocation2 + $0x69] sm:$0xff]
      %v380 = vld [vmem:[#allocation2 + $0x79] sm:$0xff]
      %v381 = vld [vmem:[#allocation2 + $0x81] sm:$0xff]
      %v382 = vld [vmem:[#allocation2 + $0x91] sm:$0xff]
      %v383 = vld [vmem:[#allocation2 + $0x99] sm:$0xff]
      %v384 = vld [vmem:[#allocation2 + $0xa9] sm:$0xff]
      %v385 = vld [vmem:[#allocation2 + $0xb1] sm:$0xff]
      %v386 = vld [vmem:[#allocation2 + $0xc1] sm:$0xff]
      %v387 = vld [vmem:[#allocation2 + $0xc9] sm:$0xff]
      %v388 = vld [vmem:[#allocation2 + $0xd9] sm:$0xff]
      %v389 = vld [vmem:[#allocation2 + $0xe1] sm:$0xff]
      %v390 = vld [vmem:[#allocation2 + $0xf1] sm:$0xff]
      %v391 = vld [vmem:[#allocation2 + $0xf9] sm:$0xff]
      %v392 = vld [vmem:[#allocation2 + $0x109] sm:$0xff]
      %v393 = vld [vmem:[#allocation2 + $0x111] sm:$0xff]
      %v394 = vld [vmem:[#allocation2 + $0x121] sm:$0xff]
      %v395 = vld [vmem:[#allocation2 + $0x129] sm:$0xff]
      %v396 = vld [vmem:[#allocation2 + $0x139] sm:$0xff]
      %v397 = vld [vmem:[#allocation2 + $0x141] sm:$0xff]
      %v398 = vld [vmem:[#allocation2 + $0x151] sm:$0xff]
      %v399 = vld [vmem:[#allocation2 + $0x159] sm:$0xff]
      %v400 = vld [vmem:[#allocation2 + $0x169] sm:$0xff]
      %v401 = vld [vmem:[#allocation2 + $0x171] sm:$0xff]
      %v402 = vpack.c.bf16 %v371, %v370
      %v403 = vpack.c.bf16 %v373, %v372
      %v404 = vpack.c.bf16 %v375, %v374
      %v405 = vpack.c.bf16 %v377, %v376
      %v406 = vpack.c.bf16 %v379, %v378
      %v407 = vpack.c.bf16 %v381, %v380
      %v408 = vpack.c.bf16 %v383, %v382
      %v409 = vpack.c.bf16 %v385, %v384
      %v410 = vpack.c.bf16 %v387, %v386
      %v411 = vpack.c.bf16 %v389, %v388
      %v412 = vpack.c.bf16 %v391, %v390
      %v413 = vpack.c.bf16 %v393, %v392
      %v414 = vpack.c.bf16 %v395, %v394
      %v415 = vpack.c.bf16 %v397, %v396
      %v416 = vpack.c.bf16 %v399, %v398
      %v417 = vpack.c.bf16 %v401, %v400
      %434 = vrot.lane.b32.xlu0 %v402, 1
      %v435 = vpop.permute.xlu0 %434
      %436 = vrot.lane.b32.xlu0 %v403, 1
      %v437 = vpop.permute.xlu0 %436
      %438 = vrot.lane.b32.xlu0 %v404, 1
      %v439 = vpop.permute.xlu0 %438
      %440 = vrot.lane.b32.xlu0 %v405, 1
      %v441 = vpop.permute.xlu0 %440
      %442 = vrot.lane.b32.xlu0 %v406, 1
      %v443 = vpop.permute.xlu0 %442
      %444 = vrot.lane.b32.xlu0 %v407, 1
      %v445 = vpop.permute.xlu0 %444
      %446 = vrot.lane.b32.xlu0 %v408, 1
      %v447 = vpop.permute.xlu0 %446
      %448 = vrot.lane.b32.xlu0 %v409, 1
      %v449 = vpop.permute.xlu0 %448
      %450 = vrot.lane.b32.xlu0 %v410, 1
      %v451 = vpop.permute.xlu0 %450
      %452 = vrot.lane.b32.xlu0 %v411, 1
      %v453 = vpop.permute.xlu0 %452
      %454 = vrot.lane.b32.xlu0 %v412, 1
      %v455 = vpop.permute.xlu0 %454
      %456 = vrot.lane.b32.xlu0 %v413, 1
      %v457 = vpop.permute.xlu0 %456
      %458 = vrot.lane.b32.xlu0 %v414, 1
      %v459 = vpop.permute.xlu0 %458
      %460 = vrot.lane.b32.xlu0 %v415, 1
      %v461 = vpop.permute.xlu0 %460
      %462 = vrot.lane.b32.xlu0 %v416, 1
      %v463 = vpop.permute.xlu0 %462
      %464 = vrot.lane.b32.xlu0 %v417, 1
      %v465 = vpop.permute.xlu0 %464
      %vm482 = vcmask 15368
      %483 = vst.msk [vmem:[#allocation3] sm:$0xff] %vm482, %v435
      %484 = vst.msk [vmem:[#allocation3 + $0x8] sm:$0xff] %vm482, %v437
      %485 = vst.msk [vmem:[#allocation3 + $0x10] sm:$0xff] %vm482, %v439
      %486 = vst.msk [vmem:[#allocation3 + $0x18] sm:$0xff] %vm482, %v441
      %487 = vst.msk [vmem:[#allocation3 + $0x20] sm:$0xff] %vm482, %v443
      %488 = vst.msk [vmem:[#allocation3 + $0x28] sm:$0xff] %vm482, %v445
      %489 = vst.msk [vmem:[#allocation3 + $0x30] sm:$0xff] %vm482, %v447
      %490 = vst.msk [vmem:[#allocation3 + $0x38] sm:$0xff] %vm482, %v449
      %491 = vst.msk [vmem:[#allocation3 + $0x40] sm:$0xff] %vm482, %v451
      %492 = vst.msk [vmem:[#allocation3 + $0x48] sm:$0xff] %vm482, %v453
      %493 = vst.msk [vmem:[#allocation3 + $0x50] sm:$0xff] %vm482, %v455
      %494 = vst.msk [vmem:[#allocation3 + $0x58] sm:$0xff] %vm482, %v457
      %495 = vst.msk [vmem:[#allocation3 + $0x60] sm:$0xff] %vm482, %v459
      %496 = vst.msk [vmem:[#allocation3 + $0x68] sm:$0xff] %vm482, %v461
      %497 = vst.msk [vmem:[#allocation3 + $0x70] sm:$0xff] %vm482, %v463
      %498 = vst.msk [vmem:[#allocation3 + $0x78] sm:$0xff] %vm482, %v465
      %v499 = vld [vmem:[#allocation2 + $0x2] sm:$0xff]
      %v500 = vld [vmem:[#allocation2 + $0xa] sm:$0xff]
      %v501 = vld [vmem:[#allocation2 + $0x1a] sm:$0xff]
      %v502 = vld [vmem:[#allocation2 + $0x22] sm:$0xff]
      %v503 = vld [vmem:[#allocation2 + $0x32] sm:$0xff]
      %v504 = vld [vmem:[#allocation2 + $0x3a] sm:$0xff]
      %v505 = vld [vmem:[#allocation2 + $0x4a] sm:$0xff]
      %v506 = vld [vmem:[#allocation2 + $0x52] sm:$0xff]
      %v507 = vld [vmem:[#allocation2 + $0x62] sm:$0xff]
      %v508 = vld [vmem:[#allocation2 + $0x6a] sm:$0xff]
      %v509 = vld [vmem:[#allocation2 + $0x7a] sm:$0xff]
      %v510 = vld [vmem:[#allocation2 + $0x82] sm:$0xff]
      %v511 = vld [vmem:[#allocation2 + $0x92] sm:$0xff]
      %v512 = vld [vmem:[#allocation2 + $0x9a] sm:$0xff]
      %v513 = vld [vmem:[#allocation2 + $0xaa] sm:$0xff]
      %v514 = vld [vmem:[#allocation2 + $0xb2] sm:$0xff]
      %v515 = vld [vmem:[#allocation2 + $0xc2] sm:$0xff]
      %v516 = vld [vmem:[#allocation2 + $0xca] sm:$0xff]
      %v517 = vld [vmem:[#allocation2 + $0xda] sm:$0xff]
      %v518 = vld [vmem:[#allocation2 + $0xe2] sm:$0xff]
      %v519 = vld [vmem:[#allocation2 + $0xf2] sm:$0xff]
      %v520 = vld [vmem:[#allocation2 + $0xfa] sm:$0xff]
      %v521 = vld [vmem:[#allocation2 + $0x10a] sm:$0xff]
      %v522 = vld [vmem:[#allocation2 + $0x112] sm:$0xff]
      %v523 = vld [vmem:[#allocation2 + $0x122] sm:$0xff]
      %v524 = vld [vmem:[#allocation2 + $0x12a] sm:$0xff]
      %v525 = vld [vmem:[#allocation2 + $0x13a] sm:$0xff]
      %v526 = vld [vmem:[#allocation2 + $0x142] sm:$0xff]
      %v527 = vld [vmem:[#allocation2 + $0x152] sm:$0xff]
      %v528 = vld [vmem:[#allocation2 + $0x15a] sm:$0xff]
      %v529 = vld [vmem:[#allocation2 + $0x16a] sm:$0xff]
      %v530 = vld [vmem:[#allocation2 + $0x172] sm:$0xff]
      %v531 = vpack.c.bf16 %v500, %v499
      %v532 = vpack.c.bf16 %v502, %v501
      %v533 = vpack.c.bf16 %v504, %v503
      %v534 = vpack.c.bf16 %v506, %v505
      %v535 = vpack.c.bf16 %v508, %v507
      %v536 = vpack.c.bf16 %v510, %v509
      %v537 = vpack.c.bf16 %v512, %v511
      %v538 = vpack.c.bf16 %v514, %v513
      %v539 = vpack.c.bf16 %v516, %v515
      %v540 = vpack.c.bf16 %v518, %v517
      %v541 = vpack.c.bf16 %v520, %v519
      %v542 = vpack.c.bf16 %v522, %v521
      %v543 = vpack.c.bf16 %v524, %v523
      %v544 = vpack.c.bf16 %v526, %v525
      %v545 = vpack.c.bf16 %v528, %v527
      %v546 = vpack.c.bf16 %v530, %v529
      %563 = vrot.lane.b32.xlu0 %v531, 2
      %v564 = vpop.permute.xlu0 %563
      %565 = vrot.lane.b32.xlu0 %v532, 2
      %v566 = vpop.permute.xlu0 %565
      %567 = vrot.lane.b32.xlu0 %v533, 2
      %v568 = vpop.permute.xlu0 %567
      %569 = vrot.lane.b32.xlu0 %v534, 2
      %v570 = vpop.permute.xlu0 %569
      %571 = vrot.lane.b32.xlu0 %v535, 2
      %v572 = vpop.permute.xlu0 %571
      %573 = vrot.lane.b32.xlu0 %v536, 2
      %v574 = vpop.permute.xlu0 %573
      %575 = vrot.lane.b32.xlu0 %v537, 2
      %v576 = vpop.permute.xlu0 %575
      %577 = vrot.lane.b32.xlu0 %v538, 2
      %v578 = vpop.permute.xlu0 %577
      %579 = vrot.lane.b32.xlu0 %v539, 2
      %v580 = vpop.permute.xlu0 %579
      %581 = vrot.lane.b32.xlu0 %v540, 2
      %v582 = vpop.permute.xlu0 %581
      %583 = vrot.lane.b32.xlu0 %v541, 2
      %v584 = vpop.permute.xlu0 %583
      %585 = vrot.lane.b32.xlu0 %v542, 2
      %v586 = vpop.permute.xlu0 %585
      %587 = vrot.lane.b32.xlu0 %v543, 2
      %v588 = vpop.permute.xlu0 %587
      %589 = vrot.lane.b32.xlu0 %v544, 2
      %v590 = vpop.permute.xlu0 %589
      %591 = vrot.lane.b32.xlu0 %v545, 2
      %v592 = vpop.permute.xlu0 %591
      %593 = vrot.lane.b32.xlu0 %v546, 2
      %v594 = vpop.permute.xlu0 %593
      %vm611 = vcmask 23568
      %612 = vst.msk [vmem:[#allocation3] sm:$0xff] %vm611, %v564
      %613 = vst.msk [vmem:[#allocation3 + $0x8] sm:$0xff] %vm611, %v566
      %614 = vst.msk [vmem:[#allocation3 + $0x10] sm:$0xff] %vm611, %v568
      %615 = vst.msk [vmem:[#allocation3 + $0x18] sm:$0xff] %vm611, %v570
      %616 = vst.msk [vmem:[#allocation3 + $0x20] sm:$0xff] %vm611, %v572
      %617 = vst.msk [vmem:[#allocation3 + $0x28] sm:$0xff] %vm611, %v574
      %618 = vst.msk [vmem:[#allocation3 + $0x30] sm:$0xff] %vm611, %v576
      %619 = vst.msk [vmem:[#allocation3 + $0x38] sm:$0xff] %vm611, %v578
      %620 = vst.msk [vmem:[#allocation3 + $0x40] sm:$0xff] %vm611, %v580
      %621 = vst.msk [vmem:[#allocation3 + $0x48] sm:$0xff] %vm611, %v582
      %622 = vst.msk [vmem:[#allocation3 + $0x50] sm:$0xff] %vm611, %v584
      %623 = vst.msk [vmem:[#allocation3 + $0x58] sm:$0xff] %vm611, %v586
      %624 = vst.msk [vmem:[#allocation3 + $0x60] sm:$0xff] %vm611, %v588
      %625 = vst.msk [vmem:[#allocation3 + $0x68] sm:$0xff] %vm611, %v590
      %626 = vst.msk [vmem:[#allocation3 + $0x70] sm:$0xff] %vm611, %v592
      %627 = vst.msk [vmem:[#allocation3 + $0x78] sm:$0xff] %vm611, %v594
      %v628 = vld [vmem:[%s208] sm:$0xff]
      %v629 = vld [vmem:[%s208 + $0x8] sm:$0xff]
      %v630 = vld [vmem:[%s208 + $0x18] sm:$0xff]
      %v631 = vld [vmem:[%s208 + $0x20] sm:$0xff]
      %v632 = vld [vmem:[%s208 + $0x30] sm:$0xff]
      %v633 = vld [vmem:[%s208 + $0x38] sm:$0xff]
      %v634 = vld [vmem:[%s208 + $0x48] sm:$0xff]
      %v635 = vld [vmem:[%s208 + $0x50] sm:$0xff]
      %v636 = vld [vmem:[%s208 + $0x60] sm:$0xff]
      %v637 = vld [vmem:[%s208 + $0x68] sm:$0xff]
      %v638 = vld [vmem:[%s208 + $0x78] sm:$0xff]
      %v639 = vld [vmem:[%s208 + $0x80] sm:$0xff]
      %v640 = vld [vmem:[%s208 + $0x90] sm:$0xff]
      %v641 = vld [vmem:[%s208 + $0x98] sm:$0xff]
      %v642 = vld [vmem:[%s208 + $0xa8] sm:$0xff]
      %v643 = vld [vmem:[%s208 + $0xb0] sm:$0xff]
      %v644 = vld [vmem:[%s208 + $0xc0] sm:$0xff]
      %v645 = vld [vmem:[%s208 + $0xc8] sm:$0xff]
      %v646 = vld [vmem:[%s208 + $0xd8] sm:$0xff]
      %v647 = vld [vmem:[%s208 + $0xe0] sm:$0xff]
      %v648 = vld [vmem:[%s208 + $0xf0] sm:$0xff]
      %v649 = vld [vmem:[%s208 + $0xf8] sm:$0xff]
      %v650 = vld [vmem:[%s208 + $0x108] sm:$0xff]
      %v651 = vld [vmem:[%s208 + $0x110] sm:$0xff]
      %v652 = vld [vmem:[%s208 + $0x120] sm:$0xff]
      %v653 = vld [vmem:[%s208 + $0x128] sm:$0xff]
      %v654 = vld [vmem:[%s208 + $0x138] sm:$0xff]
      %v655 = vld [vmem:[%s208 + $0x140] sm:$0xff]
      %v656 = vld [vmem:[%s208 + $0x150] sm:$0xff]
      %v657 = vld [vmem:[%s208 + $0x158] sm:$0xff]
      %v658 = vld [vmem:[%s208 + $0x168] sm:$0xff]
      %v659 = vld [vmem:[%s208 + $0x170] sm:$0xff]
      %v660 = vpack.c.bf16 %v629, %v628
      %v661 = vpack.c.bf16 %v631, %v630
      %v662 = vpack.c.bf16 %v633, %v632
      %v663 = vpack.c.bf16 %v635, %v634
      %v664 = vpack.c.bf16 %v637, %v636
      %v665 = vpack.c.bf16 %v639, %v638
      %v666 = vpack.c.bf16 %v641, %v640
      %v667 = vpack.c.bf16 %v643, %v642
      %v668 = vpack.c.bf16 %v645, %v644
      %v669 = vpack.c.bf16 %v647, %v646
      %v670 = vpack.c.bf16 %v649, %v648
      %v671 = vpack.c.bf16 %v651, %v650
      %v672 = vpack.c.bf16 %v653, %v652
      %v673 = vpack.c.bf16 %v655, %v654
      %v674 = vpack.c.bf16 %v657, %v656
      %v675 = vpack.c.bf16 %v659, %v658
      %692 = vrot.lane.b32.xlu0 %v660, 3
      %v693 = vpop.permute.xlu0 %692
      %694 = vrot.lane.b32.xlu0 %v661, 3
      %v695 = vpop.permute.xlu0 %694
      %696 = vrot.lane.b32.xlu0 %v662, 3
      %v697 = vpop.permute.xlu0 %696
      %698 = vrot.lane.b32.xlu0 %v663, 3
      %v699 = vpop.permute.xlu0 %698
      %700 = vrot.lane.b32.xlu0 %v664, 3
      %v701 = vpop.permute.xlu0 %700
      %702 = vrot.lane.b32.xlu0 %v665, 3
      %v703 = vpop.permute.xlu0 %702
      %704 = vrot.lane.b32.xlu0 %v666, 3
      %v705 = vpop.permute.xlu0 %704
      %706 = vrot.lane.b32.xlu0 %v667, 3
      %v707 = vpop.permute.xlu0 %706
      %708 = vrot.lane.b32.xlu0 %v668, 3
      %v709 = vpop.permute.xlu0 %708
      %710 = vrot.lane.b32.xlu0 %v669, 3
      %v711 = vpop.permute.xlu0 %710
      %712 = vrot.lane.b32.xlu0 %v670, 3
      %v713 = vpop.permute.xlu0 %712
      %714 = vrot.lane.b32.xlu0 %v671, 3
      %v715 = vpop.permute.xlu0 %714
      %716 = vrot.lane.b32.xlu0 %v672, 3
      %v717 = vpop.permute.xlu0 %716
      %718 = vrot.lane.b32.xlu0 %v673, 3
      %v719 = vpop.permute.xlu0 %718
      %720 = vrot.lane.b32.xlu0 %v674, 3
      %v721 = vpop.permute.xlu0 %720
      %722 = vrot.lane.b32.xlu0 %v675, 3
      %v723 = vpop.permute.xlu0 %722
      %vm740 = vcmask 31768
      %741 = vst.msk [vmem:[#allocation3] sm:$0xff] %vm740, %v693
      %742 = vst.msk [vmem:[#allocation3 + $0x8] sm:$0xff] %vm740, %v695
      %743 = vst.msk [vmem:[#allocation3 + $0x10] sm:$0xff] %vm740, %v697
      %744 = vst.msk [vmem:[#allocation3 + $0x18] sm:$0xff] %vm740, %v699
      %745 = vst.msk [vmem:[#allocation3 + $0x20] sm:$0xff] %vm740, %v701
      %746 = vst.msk [vmem:[#allocation3 + $0x28] sm:$0xff] %vm740, %v703
      %747 = vst.msk [vmem:[#allocation3 + $0x30] sm:$0xff] %vm740, %v705
      %748 = vst.msk [vmem:[#allocation3 + $0x38] sm:$0xff] %vm740, %v707
      %749 = vst.msk [vmem:[#allocation3 + $0x40] sm:$0xff] %vm740, %v709
      %750 = vst.msk [vmem:[#allocation3 + $0x48] sm:$0xff] %vm740, %v711
      %751 = vst.msk [vmem:[#allocation3 + $0x50] sm:$0xff] %vm740, %v713
      %752 = vst.msk [vmem:[#allocation3 + $0x58] sm:$0xff] %vm740, %v715
      %753 = vst.msk [vmem:[#allocation3 + $0x60] sm:$0xff] %vm740, %v717
      %754 = vst.msk [vmem:[#allocation3 + $0x68] sm:$0xff] %vm740, %v719
      %755 = vst.msk [vmem:[#allocation3 + $0x70] sm:$0xff] %vm740, %v721
      %756 = vst.msk [vmem:[#allocation3 + $0x78] sm:$0xff] %vm740, %v723
      %v757 = vld [vmem:[%s208 + $0x1] sm:$0xff]
      %v758 = vld [vmem:[%s208 + $0x9] sm:$0xff]
      %v759 = vld [vmem:[%s208 + $0x19] sm:$0xff]
      %v760 = vld [vmem:[%s208 + $0x21] sm:$0xff]
      %v761 = vld [vmem:[%s208 + $0x31] sm:$0xff]
      %v762 = vld [vmem:[%s208 + $0x39] sm:$0xff]
      %v763 = vld [vmem:[%s208 + $0x49] sm:$0xff]
      %v764 = vld [vmem:[%s208 + $0x51] sm:$0xff]
      %v765 = vld [vmem:[%s208 + $0x61] sm:$0xff]
      %v766 = vld [vmem:[%s208 + $0x69] sm:$0xff]
      %v767 = vld [vmem:[%s208 + $0x79] sm:$0xff]
      %v768 = vld [vmem:[%s208 + $0x81] sm:$0xff]
      %v769 = vld [vmem:[%s208 + $0x91] sm:$0xff]
      %v770 = vld [vmem:[%s208 + $0x99] sm:$0xff]
      %v771 = vld [vmem:[%s208 + $0xa9] sm:$0xff]
      %v772 = vld [vmem:[%s208 + $0xb1] sm:$0xff]
      %v773 = vld [vmem:[%s208 + $0xc1] sm:$0xff]
      %v774 = vld [vmem:[%s208 + $0xc9] sm:$0xff]
      %v775 = vld [vmem:[%s208 + $0xd9] sm:$0xff]
      %v776 = vld [vmem:[%s208 + $0xe1] sm:$0xff]
      %v777 = vld [vmem:[%s208 + $0xf1] sm:$0xff]
      %v778 = vld [vmem:[%s208 + $0xf9] sm:$0xff]
      %v779 = vld [vmem:[%s208 + $0x109] sm:$0xff]
      %v780 = vld [vmem:[%s208 + $0x111] sm:$0xff]
      %v781 = vld [vmem:[%s208 + $0x121] sm:$0xff]
      %v782 = vld [vmem:[%s208 + $0x129] sm:$0xff]
      %v783 = vld [vmem:[%s208 + $0x139] sm:$0xff]
      %v784 = vld [vmem:[%s208 + $0x141] sm:$0xff]
      %v785 = vld [vmem:[%s208 + $0x151] sm:$0xff]
      %v786 = vld [vmem:[%s208 + $0x159] sm:$0xff]
      %v787 = vld [vmem:[%s208 + $0x169] sm:$0xff]
      %v788 = vld [vmem:[%s208 + $0x171] sm:$0xff]
      %v789 = vpack.c.bf16 %v758, %v757
      %v790 = vpack.c.bf16 %v760, %v759
      %v791 = vpack.c.bf16 %v762, %v761
      %v792 = vpack.c.bf16 %v764, %v763
      %v793 = vpack.c.bf16 %v766, %v765
      %v794 = vpack.c.bf16 %v768, %v767
      %v795 = vpack.c.bf16 %v770, %v769
      %v796 = vpack.c.bf16 %v772, %v771
      %v797 = vpack.c.bf16 %v774, %v773
      %v798 = vpack.c.bf16 %v776, %v775
      %v799 = vpack.c.bf16 %v778, %v777
      %v800 = vpack.c.bf16 %v780, %v779
      %v801 = vpack.c.bf16 %v782, %v781
      %v802 = vpack.c.bf16 %v784, %v783
      %v803 = vpack.c.bf16 %v786, %v785
      %v804 = vpack.c.bf16 %v788, %v787
      %821 = vrot.lane.b32.xlu0 %v789, 4
      %v822 = vpop.permute.xlu0 %821
      %823 = vrot.lane.b32.xlu0 %v790, 4
      %v824 = vpop.permute.xlu0 %823
      %825 = vrot.lane.b32.xlu0 %v791, 4
      %v826 = vpop.permute.xlu0 %825
      %827 = vrot.lane.b32.xlu0 %v792, 4
      %v828 = vpop.permute.xlu0 %827
      %829 = vrot.lane.b32.xlu0 %v793, 4
      %v830 = vpop.permute.xlu0 %829
      %831 = vrot.lane.b32.xlu0 %v794, 4
      %v832 = vpop.permute.xlu0 %831
      %833 = vrot.lane.b32.xlu0 %v795, 4
      %v834 = vpop.permute.xlu0 %833
      %835 = vrot.lane.b32.xlu0 %v796, 4
      %v836 = vpop.permute.xlu0 %835
      %837 = vrot.lane.b32.xlu0 %v797, 4
      %v838 = vpop.permute.xlu0 %837
      %839 = vrot.lane.b32.xlu0 %v798, 4
      %v840 = vpop.permute.xlu0 %839
      %841 = vrot.lane.b32.xlu0 %v799, 4
      %v842 = vpop.permute.xlu0 %841
      %843 = vrot.lane.b32.xlu0 %v800, 4
      %v844 = vpop.permute.xlu0 %843
      %845 = vrot.lane.b32.xlu0 %v801, 4
      %v846 = vpop.permute.xlu0 %845
      %847 = vrot.lane.b32.xlu0 %v802, 4
      %v848 = vpop.permute.xlu0 %847
      %849 = vrot.lane.b32.xlu0 %v803, 4
      %v850 = vpop.permute.xlu0 %849
      %851 = vrot.lane.b32.xlu0 %v804, 4
      %v852 = vpop.permute.xlu0 %851
      %vm869 = vcmask 39968
      %870 = vst.msk [vmem:[#allocation3] sm:$0xff] %vm869, %v822
      %871 = vst.msk [vmem:[#allocation3 + $0x8] sm:$0xff] %vm869, %v824
      %872 = vst.msk [vmem:[#allocation3 + $0x10] sm:$0xff] %vm869, %v826
      %873 = vst.msk [vmem:[#allocation3 + $0x18] sm:$0xff] %vm869, %v828
      %874 = vst.msk [vmem:[#allocation3 + $0x20] sm:$0xff] %vm869, %v830
      %875 = vst.msk [vmem:[#allocation3 + $0x28] sm:$0xff] %vm869, %v832
      %876 = vst.msk [vmem:[#allocation3 + $0x30] sm:$0xff] %vm869, %v834
      %877 = vst.msk [vmem:[#allocation3 + $0x38] sm:$0xff] %vm869, %v836
      %878 = vst.msk [vmem:[#allocation3 + $0x40] sm:$0xff] %vm869, %v838
      %879 = vst.msk [vmem:[#allocation3 + $0x48] sm:$0xff] %vm869, %v840
      %880 = vst.msk [vmem:[#allocation3 + $0x50] sm:$0xff] %vm869, %v842
      %881 = vst.msk [vmem:[#allocation3 + $0x58] sm:$0xff] %vm869, %v844
      %882 = vst.msk [vmem:[#allocation3 + $0x60] sm:$0xff] %vm869, %v846
      %883 = vst.msk [vmem:[#allocation3 + $0x68] sm:$0xff] %vm869, %v848
      %884 = vst.msk [vmem:[#allocation3 + $0x70] sm:$0xff] %vm869, %v850
      %885 = vst.msk [vmem:[#allocation3 + $0x78] sm:$0xff] %vm869, %v852
      %v886 = vld [vmem:[%s208 + $0x2] sm:$0xff]
      %v887 = vld [vmem:[%s208 + $0xa] sm:$0xff]
      %v888 = vld [vmem:[%s208 + $0x1a] sm:$0xff]
      %v889 = vld [vmem:[%s208 + $0x22] sm:$0xff]
      %v890 = vld [vmem:[%s208 + $0x32] sm:$0xff]
      %v891 = vld [vmem:[%s208 + $0x3a] sm:$0xff]
      %v892 = vld [vmem:[%s208 + $0x4a] sm:$0xff]
      %v893 = vld [vmem:[%s208 + $0x52] sm:$0xff]
      %v894 = vld [vmem:[%s208 + $0x62] sm:$0xff]
      %v895 = vld [vmem:[%s208 + $0x6a] sm:$0xff]
      %v896 = vld [vmem:[%s208 + $0x7a] sm:$0xff]
      %v897 = vld [vmem:[%s208 + $0x82] sm:$0xff]
      %v898 = vld [vmem:[%s208 + $0x92] sm:$0xff]
      %v899 = vld [vmem:[%s208 + $0x9a] sm:$0xff]
      %v900 = vld [vmem:[%s208 + $0xaa] sm:$0xff]
      %v901 = vld [vmem:[%s208 + $0xb2] sm:$0xff]
      %v902 = vld [vmem:[%s208 + $0xc2] sm:$0xff]
      %v903 = vld [vmem:[%s208 + $0xca] sm:$0xff]
      %v904 = vld [vmem:[%s208 + $0xda] sm:$0xff]
      %v905 = vld [vmem:[%s208 + $0xe2] sm:$0xff]
      %v906 = vld [vmem:[%s208 + $0xf2] sm:$0xff]
      %v907 = vld [vmem:[%s208 + $0xfa] sm:$0xff]
      %v908 = vld [vmem:[%s208 + $0x10a] sm:$0xff]
      %v909 = vld [vmem:[%s208 + $0x112] sm:$0xff]
      %v910 = vld [vmem:[%s208 + $0x122] sm:$0xff]
      %v911 = vld [vmem:[%s208 + $0x12a] sm:$0xff]
      %v912 = vld [vmem:[%s208 + $0x13a] sm:$0xff]
      %v913 = vld [vmem:[%s208 + $0x142] sm:$0xff]
      %v914 = vld [vmem:[%s208 + $0x152] sm:$0xff]
      %v915 = vld [vmem:[%s208 + $0x15a] sm:$0xff]
      %v916 = vld [vmem:[%s208 + $0x16a] sm:$0xff]
      %v917 = vld [vmem:[%s208 + $0x172] sm:$0xff]
      %v918 = vpack.c.bf16 %v887, %v886
      %v919 = vpack.c.bf16 %v889, %v888
      %v920 = vpack.c.bf16 %v891, %v890
      %v921 = vpack.c.bf16 %v893, %v892
      %v922 = vpack.c.bf16 %v895, %v894
      %v923 = vpack.c.bf16 %v897, %v896
      %v924 = vpack.c.bf16 %v899, %v898
      %v925 = vpack.c.bf16 %v901, %v900
      %v926 = vpack.c.bf16 %v903, %v902
      %v927 = vpack.c.bf16 %v905, %v904
      %v928 = vpack.c.bf16 %v907, %v906
      %v929 = vpack.c.bf16 %v909, %v908
      %v930 = vpack.c.bf16 %v911, %v910
      %v931 = vpack.c.bf16 %v913, %v912
      %v932 = vpack.c.bf16 %v915, %v914
      %v933 = vpack.c.bf16 %v917, %v916
      %950 = vrot.lane.b32.xlu0 %v918, 5
      %v951 = vpop.permute.xlu0 %950
      %952 = vrot.lane.b32.xlu0 %v919, 5
      %v953 = vpop.permute.xlu0 %952
      %954 = vrot.lane.b32.xlu0 %v920, 5
      %v955 = vpop.permute.xlu0 %954
      %956 = vrot.lane.b32.xlu0 %v921, 5
      %v957 = vpop.permute.xlu0 %956
      %958 = vrot.lane.b32.xlu0 %v922, 5
      %v959 = vpop.permute.xlu0 %958
      %960 = vrot.lane.b32.xlu0 %v923, 5
      %v961 = vpop.permute.xlu0 %960
      %962 = vrot.lane.b32.xlu0 %v924, 5
      %v963 = vpop.permute.xlu0 %962
      %964 = vrot.lane.b32.xlu0 %v925, 5
      %v965 = vpop.permute.xlu0 %964
      %966 = vrot.lane.b32.xlu0 %v926, 5
      %v967 = vpop.permute.xlu0 %966
      %968 = vrot.lane.b32.xlu0 %v927, 5
      %v969 = vpop.permute.xlu0 %968
      %970 = vrot.lane.b32.xlu0 %v928, 5
      %v971 = vpop.permute.xlu0 %970
      %972 = vrot.lane.b32.xlu0 %v929, 5
      %v973 = vpop.permute.xlu0 %972
      %974 = vrot.lane.b32.xlu0 %v930, 5
      %v975 = vpop.permute.xlu0 %974
      %976 = vrot.lane.b32.xlu0 %v931, 5
      %v977 = vpop.permute.xlu0 %976
      %978 = vrot.lane.b32.xlu0 %v932, 5
      %v979 = vpop.permute.xlu0 %978
      %980 = vrot.lane.b32.xlu0 %v933, 5
      %v981 = vpop.permute.xlu0 %980
      %vm998 = vcmask 48168
      %999 = vst.msk [vmem:[#allocation3] sm:$0xff] %vm998, %v951
      %1000 = vst.msk [vmem:[#allocation3 + $0x8] sm:$0xff] %vm998, %v953
      %1001 = vst.msk [vmem:[#allocation3 + $0x10] sm:$0xff] %vm998, %v955
      %1002 = vst.msk [vmem:[#allocation3 + $0x18] sm:$0xff] %vm998, %v957
      %1003 = vst.msk [vmem:[#allocation3 + $0x20] sm:$0xff] %vm998, %v959
      %1004 = vst.msk [vmem:[#allocation3 + $0x28] sm:$0xff] %vm998, %v961
      %1005 = vst.msk [vmem:[#allocation3 + $0x30] sm:$0xff] %vm998, %v963
      %1006 = vst.msk [vmem:[#allocation3 + $0x38] sm:$0xff] %vm998, %v965
      %1007 = vst.msk [vmem:[#allocation3 + $0x40] sm:$0xff] %vm998, %v967
      %1008 = vst.msk [vmem:[#allocation3 + $0x48] sm:$0xff] %vm998, %v969
      %1009 = vst.msk [vmem:[#allocation3 + $0x50] sm:$0xff] %vm998, %v971
      %1010 = vst.msk [vmem:[#allocation3 + $0x58] sm:$0xff] %vm998, %v973
      %1011 = vst.msk [vmem:[#allocation3 + $0x60] sm:$0xff] %vm998, %v975
      %1012 = vst.msk [vmem:[#allocation3 + $0x68] sm:$0xff] %vm998, %v977
      %1013 = vst.msk [vmem:[#allocation3 + $0x70] sm:$0xff] %vm998, %v979
      %1014 = vst.msk [vmem:[#allocation3 + $0x78] sm:$0xff] %vm998, %v981
      %s1015 = scalar_lea.vmem [#allocation2], 48
      %v1016 = vld [vmem:[%s1015] sm:$0xff]
      %v1017 = vld [vmem:[%s1015 + $0x8] sm:$0xff]
      %v1018 = vld [vmem:[%s1015 + $0x18] sm:$0xff]
      %v1019 = vld [vmem:[%s1015 + $0x20] sm:$0xff]
      %v1020 = vld [vmem:[%s1015 + $0x30] sm:$0xff]
      %v1021 = vld [vmem:[%s1015 + $0x38] sm:$0xff]
      %v1022 = vld [vmem:[%s1015 + $0x48] sm:$0xff]
      %v1023 = vld [vmem:[%s1015 + $0x50] sm:$0xff]
      %v1024 = vld [vmem:[%s1015 + $0x60] sm:$0xff]
      %v1025 = vld [vmem:[%s1015 + $0x68] sm:$0xff]
      %v1026 = vld [vmem:[%s1015 + $0x78] sm:$0xff]
      %v1027 = vld [vmem:[%s1015 + $0x80] sm:$0xff]
      %v1028 = vld [vmem:[%s1015 + $0x90] sm:$0xff]
      %v1029 = vld [vmem:[%s1015 + $0x98] sm:$0xff]
      %v1030 = vld [vmem:[%s1015 + $0xa8] sm:$0xff]
      %v1031 = vld [vmem:[%s1015 + $0xb0] sm:$0xff]
      %v1032 = vld [vmem:[%s1015 + $0xc0] sm:$0xff]
      %v1033 = vld [vmem:[%s1015 + $0xc8] sm:$0xff]
      %v1034 = vld [vmem:[%s1015 + $0xd8] sm:$0xff]
      %v1035 = vld [vmem:[%s1015 + $0xe0] sm:$0xff]
      %v1036 = vld [vmem:[%s1015 + $0xf0] sm:$0xff]
      %v1037 = vld [vmem:[%s1015 + $0xf8] sm:$0xff]
      %v1038 = vld [vmem:[%s1015 + $0x108] sm:$0xff]
      %v1039 = vld [vmem:[%s1015 + $0x110] sm:$0xff]
      %v1040 = vld [vmem:[%s1015 + $0x120] sm:$0xff]
      %v1041 = vld [vmem:[%s1015 + $0x128] sm:$0xff]
      %v1042 = vld [vmem:[%s1015 + $0x138] sm:$0xff]
      %v1043 = vld [vmem:[%s1015 + $0x140] sm:$0xff]
      %v1044 = vld [vmem:[%s1015 + $0x150] sm:$0xff]
      %v1045 = vld [vmem:[%s1015 + $0x158] sm:$0xff]
      %v1046 = vld [vmem:[%s1015 + $0x168] sm:$0xff]
      %v1047 = vld [vmem:[%s1015 + $0x170] sm:$0xff]
      %v1048 = vpack.c.bf16 %v1017, %v1016
      %v1049 = vpack.c.bf16 %v1019, %v1018
      %v1050 = vpack.c.bf16 %v1021, %v1020
      %v1051 = vpack.c.bf16 %v1023, %v1022
      %v1052 = vpack.c.bf16 %v1025, %v1024
      %v1053 = vpack.c.bf16 %v1027, %v1026
      %v1054 = vpack.c.bf16 %v1029, %v1028
      %v1055 = vpack.c.bf16 %v1031, %v1030
      %v1056 = vpack.c.bf16 %v1033, %v1032
      %v1057 = vpack.c.bf16 %v1035, %v1034
      %v1058 = vpack.c.bf16 %v1037, %v1036
      %v1059 = vpack.c.bf16 %v1039, %v1038
      %v1060 = vpack.c.bf16 %v1041, %v1040
      %v1061 = vpack.c.bf16 %v1043, %v1042
      %v1062 = vpack.c.bf16 %v1045, %v1044
      %v1063 = vpack.c.bf16 %v1047, %v1046
      %1080 = vrot.lane.b32.xlu0 %v1048, 6
      %v1081 = vpop.permute.xlu0 %1080
      %1082 = vrot.lane.b32.xlu0 %v1049, 6
      %v1083 = vpop.permute.xlu0 %1082
      %1084 = vrot.lane.b32.xlu0 %v1050, 6
      %v1085 = vpop.permute.xlu0 %1084
      %1086 = vrot.lane.b32.xlu0 %v1051, 6
      %v1087 = vpop.permute.xlu0 %1086
      %1088 = vrot.lane.b32.xlu0 %v1052, 6
      %v1089 = vpop.permute.xlu0 %1088
      %1090 = vrot.lane.b32.xlu0 %v1053, 6
      %v1091 = vpop.permute.xlu0 %1090
      %1092 = vrot.lane.b32.xlu0 %v1054, 6
      %v1093 = vpop.permute.xlu0 %1092
      %1094 = vrot.lane.b32.xlu0 %v1055, 6
      %v1095 = vpop.permute.xlu0 %1094
      %1096 = vrot.lane.b32.xlu0 %v1056, 6
      %v1097 = vpop.permute.xlu0 %1096
      %1098 = vrot.lane.b32.xlu0 %v1057, 6
      %v1099 = vpop.permute.xlu0 %1098
      %1100 = vrot.lane.b32.xlu0 %v1058, 6
      %v1101 = vpop.permute.xlu0 %1100
      %1102 = vrot.lane.b32.xlu0 %v1059, 6
      %v1103 = vpop.permute.xlu0 %1102
      %1104 = vrot.lane.b32.xlu0 %v1060, 6
      %v1105 = vpop.permute.xlu0 %1104
      %1106 = vrot.lane.b32.xlu0 %v1061, 6
      %v1107 = vpop.permute.xlu0 %1106
      %1108 = vrot.lane.b32.xlu0 %v1062, 6
      %v1109 = vpop.permute.xlu0 %1108
      %1110 = vrot.lane.b32.xlu0 %v1063, 6
      %v1111 = vpop.permute.xlu0 %1110
      %vm1128 = vcmask 56368
      %1129 = vst.msk [vmem:[#allocation3] sm:$0xff] %vm1128, %v1081
      %1130 = vst.msk [vmem:[#allocation3 + $0x8] sm:$0xff] %vm1128, %v1083
      %1131 = vst.msk [vmem:[#allocation3 + $0x10] sm:$0xff] %vm1128, %v1085
      %1132 = vst.msk [vmem:[#allocation3 + $0x18] sm:$0xff] %vm1128, %v1087
      %1133 = vst.msk [vmem:[#allocation3 + $0x20] sm:$0xff] %vm1128, %v1089
      %1134 = vst.msk [vmem:[#allocation3 + $0x28] sm:$0xff] %vm1128, %v1091
      %1135 = vst.msk [vmem:[#allocation3 + $0x30] sm:$0xff] %vm1128, %v1093
      %1136 = vst.msk [vmem:[#allocation3 + $0x38] sm:$0xff] %vm1128, %v1095
      %1137 = vst.msk [vmem:[#allocation3 + $0x40] sm:$0xff] %vm1128, %v1097
      %1138 = vst.msk [vmem:[#allocation3 + $0x48] sm:$0xff] %vm1128, %v1099
      %1139 = vst.msk [vmem:[#allocation3 + $0x50] sm:$0xff] %vm1128, %v1101
      %1140 = vst.msk [vmem:[#allocation3 + $0x58] sm:$0xff] %vm1128, %v1103
      %1141 = vst.msk [vmem:[#allocation3 + $0x60] sm:$0xff] %vm1128, %v1105
      %1142 = vst.msk [vmem:[#allocation3 + $0x68] sm:$0xff] %vm1128, %v1107
      %1143 = vst.msk [vmem:[#allocation3 + $0x70] sm:$0xff] %vm1128, %v1109
      %1144 = vst.msk [vmem:[#allocation3 + $0x78] sm:$0xff] %vm1128, %v1111
      %v1145 = vld [vmem:[%s1015 + $0x1] sm:$0xff]
      %v1146 = vld [vmem:[%s1015 + $0x9] sm:$0xff]
      %v1147 = vld [vmem:[%s1015 + $0x19] sm:$0xff]
      %v1148 = vld [vmem:[%s1015 + $0x21] sm:$0xff]
      %v1149 = vld [vmem:[%s1015 + $0x31] sm:$0xff]
      %v1150 = vld [vmem:[%s1015 + $0x39] sm:$0xff]
      %v1151 = vld [vmem:[%s1015 + $0x49] sm:$0xff]
      %v1152 = vld [vmem:[%s1015 + $0x51] sm:$0xff]
      %v1153 = vld [vmem:[%s1015 + $0x61] sm:$0xff]
      %v1154 = vld [vmem:[%s1015 + $0x69] sm:$0xff]
      %v1155 = vld [vmem:[%s1015 + $0x79] sm:$0xff]
      %v1156 = vld [vmem:[%s1015 + $0x81] sm:$0xff]
      %v1157 = vld [vmem:[%s1015 + $0x91] sm:$0xff]
      %v1158 = vld [vmem:[%s1015 + $0x99] sm:$0xff]
      %v1159 = vld [vmem:[%s1015 + $0xa9] sm:$0xff]
      %v1160 = vld [vmem:[%s1015 + $0xb1] sm:$0xff]
      %v1161 = vld [vmem:[%s1015 + $0xc1] sm:$0xff]
      %v1162 = vld [vmem:[%s1015 + $0xc9] sm:$0xff]
      %v1163 = vld [vmem:[%s1015 + $0xd9] sm:$0xff]
      %v1164 = vld [vmem:[%s1015 + $0xe1] sm:$0xff]
      %v1165 = vld [vmem:[%s1015 + $0xf1] sm:$0xff]
      %v1166 = vld [vmem:[%s1015 + $0xf9] sm:$0xff]
      %v1167 = vld [vmem:[%s1015 + $0x109] sm:$0xff]
      %v1168 = vld [vmem:[%s1015 + $0x111] sm:$0xff]
      %v1169 = vld [vmem:[%s1015 + $0x121] sm:$0xff]
      %v1170 = vld [vmem:[%s1015 + $0x129] sm:$0xff]
      %v1171 = vld [vmem:[%s1015 + $0x139] sm:$0xff]
      %v1172 = vld [vmem:[%s1015 + $0x141] sm:$0xff]
      %v1173 = vld [vmem:[%s1015 + $0x151] sm:$0xff]
      %v1174 = vld [vmem:[%s1015 + $0x159] sm:$0xff]
      %v1175 = vld [vmem:[%s1015 + $0x169] sm:$0xff]
      %v1176 = vld [vmem:[%s1015 + $0x171] sm:$0xff]
      %v1177 = vpack.c.bf16 %v1146, %v1145
      %v1178 = vpack.c.bf16 %v1148, %v1147
      %v1179 = vpack.c.bf16 %v1150, %v1149
      %v1180 = vpack.c.bf16 %v1152, %v1151
      %v1181 = vpack.c.bf16 %v1154, %v1153
      %v1182 = vpack.c.bf16 %v1156, %v1155
      %v1183 = vpack.c.bf16 %v1158, %v1157
      %v1184 = vpack.c.bf16 %v1160, %v1159
      %v1185 = vpack.c.bf16 %v1162, %v1161
      %v1186 = vpack.c.bf16 %v1164, %v1163
      %v1187 = vpack.c.bf16 %v1166, %v1165
      %v1188 = vpack.c.bf16 %v1168, %v1167
      %v1189 = vpack.c.bf16 %v1170, %v1169
      %v1190 = vpack.c.bf16 %v1172, %v1171
      %v1191 = vpack.c.bf16 %v1174, %v1173
      %v1192 = vpack.c.bf16 %v1176, %v1175
      %1209 = vrot.lane.b32.xlu0 %v1177, 7
      %v1210 = vpop.permute.xlu0 %1209
      %1211 = vrot.lane.b32.xlu0 %v1178, 7
      %v1212 = vpop.permute.xlu0 %1211
      %1213 = vrot.lane.b32.xlu0 %v1179, 7
      %v1214 = vpop.permute.xlu0 %1213
      %1215 = vrot.lane.b32.xlu0 %v1180, 7
      %v1216 = vpop.permute.xlu0 %1215
      %1217 = vrot.lane.b32.xlu0 %v1181, 7
      %v1218 = vpop.permute.xlu0 %1217
      %1219 = vrot.lane.b32.xlu0 %v1182, 7
      %v1220 = vpop.permute.xlu0 %1219
      %1221 = vrot.lane.b32.xlu0 %v1183, 7
      %v1222 = vpop.permute.xlu0 %1221
      %1223 = vrot.lane.b32.xlu0 %v1184, 7
      %v1224 = vpop.permute.xlu0 %1223
      %1225 = vrot.lane.b32.xlu0 %v1185, 7
      %v1226 = vpop.permute.xlu0 %1225
      %1227 = vrot.lane.b32.xlu0 %v1186, 7
      %v1228 = vpop.permute.xlu0 %1227
      %1229 = vrot.lane.b32.xlu0 %v1187, 7
      %v1230 = vpop.permute.xlu0 %1229
      %1231 = vrot.lane.b32.xlu0 %v1188, 7
      %v1232 = vpop.permute.xlu0 %1231
      %1233 = vrot.lane.b32.xlu0 %v1189, 7
      %v1234 = vpop.permute.xlu0 %1233
      %1235 = vrot.lane.b32.xlu0 %v1190, 7
      %v1236 = vpop.permute.xlu0 %1235
      %1237 = vrot.lane.b32.xlu0 %v1191, 7
      %v1238 = vpop.permute.xlu0 %1237
      %1239 = vrot.lane.b32.xlu0 %v1192, 7
      %v1240 = vpop.permute.xlu0 %1239
      %vm1257 = vcmask 64568
      %1258 = vst.msk [vmem:[#allocation3] sm:$0xff] %vm1257, %v1210
      %1259 = vst.msk [vmem:[#allocation3 + $0x8] sm:$0xff] %vm1257, %v1212
      %1260 = vst.msk [vmem:[#allocation3 + $0x10] sm:$0xff] %vm1257, %v1214
      %1261 = vst.msk [vmem:[#allocation3 + $0x18] sm:$0xff] %vm1257, %v1216
      %1262 = vst.msk [vmem:[#allocation3 + $0x20] sm:$0xff] %vm1257, %v1218
      %1263 = vst.msk [vmem:[#allocation3 + $0x28] sm:$0xff] %vm1257, %v1220
      %1264 = vst.msk [vmem:[#allocation3 + $0x30] sm:$0xff] %vm1257, %v1222
      %1265 = vst.msk [vmem:[#allocation3 + $0x38] sm:$0xff] %vm1257, %v1224
      %1266 = vst.msk [vmem:[#allocation3 + $0x40] sm:$0xff] %vm1257, %v1226
      %1267 = vst.msk [vmem:[#allocation3 + $0x48] sm:$0xff] %vm1257, %v1228
      %1268 = vst.msk [vmem:[#allocation3 + $0x50] sm:$0xff] %vm1257, %v1230
      %1269 = vst.msk [vmem:[#allocation3 + $0x58] sm:$0xff] %vm1257, %v1232
      %1270 = vst.msk [vmem:[#allocation3 + $0x60] sm:$0xff] %vm1257, %v1234
      %1271 = vst.msk [vmem:[#allocation3 + $0x68] sm:$0xff] %vm1257, %v1236
      %1272 = vst.msk [vmem:[#allocation3 + $0x70] sm:$0xff] %vm1257, %v1238
      %1273 = vst.msk [vmem:[#allocation3 + $0x78] sm:$0xff] %vm1257, %v1240
      %v1274 = vld [vmem:[%s1015 + $0x2] sm:$0xff]
      %v1275 = vld [vmem:[%s1015 + $0xa] sm:$0xff]
      %v1276 = vld [vmem:[%s1015 + $0x1a] sm:$0xff]
      %v1277 = vld [vmem:[%s1015 + $0x22] sm:$0xff]
      %v1278 = vld [vmem:[%s1015 + $0x32] sm:$0xff]
      %v1279 = vld [vmem:[%s1015 + $0x3a] sm:$0xff]
      %v1280 = vld [vmem:[%s1015 + $0x4a] sm:$0xff]
      %v1281 = vld [vmem:[%s1015 + $0x52] sm:$0xff]
      %v1282 = vld [vmem:[%s1015 + $0x62] sm:$0xff]
      %v1283 = vld [vmem:[%s1015 + $0x6a] sm:$0xff]
      %v1284 = vld [vmem:[%s1015 + $0x7a] sm:$0xff]
      %v1285 = vld [vmem:[%s1015 + $0x82] sm:$0xff]
      %v1286 = vld [vmem:[%s1015 + $0x92] sm:$0xff]
      %v1287 = vld [vmem:[%s1015 + $0x9a] sm:$0xff]
      %v1288 = vld [vmem:[%s1015 + $0xaa] sm:$0xff]
      %v1289 = vld [vmem:[%s1015 + $0xb2] sm:$0xff]
      %v1290 = vld [vmem:[%s1015 + $0xc2] sm:$0xff]
      %v1291 = vld [vmem:[%s1015 + $0xca] sm:$0xff]
      %v1292 = vld [vmem:[%s1015 + $0xda] sm:$0xff]
      %v1293 = vld [vmem:[%s1015 + $0xe2] sm:$0xff]
      %v1294 = vld [vmem:[%s1015 + $0xf2] sm:$0xff]
      %v1295 = vld [vmem:[%s1015 + $0xfa] sm:$0xff]
      %v1296 = vld [vmem:[%s1015 + $0x10a] sm:$0xff]
      %v1297 = vld [vmem:[%s1015 + $0x112] sm:$0xff]
      %v1298 = vld [vmem:[%s1015 + $0x122] sm:$0xff]
      %v1299 = vld [vmem:[%s1015 + $0x12a] sm:$0xff]
      %v1300 = vld [vmem:[%s1015 + $0x13a] sm:$0xff]
      %v1301 = vld [vmem:[%s1015 + $0x142] sm:$0xff]
      %v1302 = vld [vmem:[%s1015 + $0x152] sm:$0xff]
      %v1303 = vld [vmem:[%s1015 + $0x15a] sm:$0xff]
      %v1304 = vld [vmem:[%s1015 + $0x16a] sm:$0xff]
      %v1305 = vld [vmem:[%s1015 + $0x172] sm:$0xff]
      %v1306 = vpack.c.bf16 %v1275, %v1274
      %v1307 = vpack.c.bf16 %v1277, %v1276
      %v1308 = vpack.c.bf16 %v1279, %v1278
      %v1309 = vpack.c.bf16 %v1281, %v1280
      %v1310 = vpack.c.bf16 %v1283, %v1282
      %v1311 = vpack.c.bf16 %v1285, %v1284
      %v1312 = vpack.c.bf16 %v1287, %v1286
      %v1313 = vpack.c.bf16 %v1289, %v1288
      %v1314 = vpack.c.bf16 %v1291, %v1290
      %v1315 = vpack.c.bf16 %v1293, %v1292
      %v1316 = vpack.c.bf16 %v1295, %v1294
      %v1317 = vpack.c.bf16 %v1297, %v1296
      %v1318 = vpack.c.bf16 %v1299, %v1298
      %v1319 = vpack.c.bf16 %v1301, %v1300
      %v1320 = vpack.c.bf16 %v1303, %v1302
      %v1321 = vpack.c.bf16 %v1305, %v1304
      %1338 = vrot.lane.b32.xlu0 %v1306, 8
      %v1339 = vpop.permute.xlu0 %1338
      %1340 = vrot.lane.b32.xlu0 %v1307, 8
      %v1341 = vpop.permute.xlu0 %1340
      %1342 = vrot.lane.b32.xlu0 %v1308, 8
      %v1343 = vpop.permute.xlu0 %1342
      %1344 = vrot.lane.b32.xlu0 %v1309, 8
      %v1345 = vpop.permute.xlu0 %1344
      %1346 = vrot.lane.b32.xlu0 %v1310, 8
      %v1347 = vpop.permute.xlu0 %1346
      %1348 = vrot.lane.b32.xlu0 %v1311, 8
      %v1349 = vpop.permute.xlu0 %1348
      %1350 = vrot.lane.b32.xlu0 %v1312, 8
      %v1351 = vpop.permute.xlu0 %1350
      %1352 = vrot.lane.b32.xlu0 %v1313, 8
      %v1353 = vpop.permute.xlu0 %1352
      %1354 = vrot.lane.b32.xlu0 %v1314, 8
      %v1355 = vpop.permute.xlu0 %1354
      %1356 = vrot.lane.b32.xlu0 %v1315, 8
      %v1357 = vpop.permute.xlu0 %1356
      %1358 = vrot.lane.b32.xlu0 %v1316, 8
      %v1359 = vpop.permute.xlu0 %1358
      %1360 = vrot.lane.b32.xlu0 %v1317, 8
      %v1361 = vpop.permute.xlu0 %1360
      %1362 = vrot.lane.b32.xlu0 %v1318, 8
      %v1363 = vpop.permute.xlu0 %1362
      %1364 = vrot.lane.b32.xlu0 %v1319, 8
      %v1365 = vpop.permute.xlu0 %1364
      %1366 = vrot.lane.b32.xlu0 %v1320, 8
      %v1367 = vpop.permute.xlu0 %1366
      %1368 = vrot.lane.b32.xlu0 %v1321, 8
      %v1369 = vpop.permute.xlu0 %1368
      %vm1386 = vcmask 72768
      %1387 = vst.msk [vmem:[#allocation3] sm:$0xff] %vm1386, %v1339
      %1388 = vst.msk [vmem:[#allocation3 + $0x8] sm:$0xff] %vm1386, %v1341
      %1389 = vst.msk [vmem:[#allocation3 + $0x10] sm:$0xff] %vm1386, %v1343
      %1390 = vst.msk [vmem:[#allocation3 + $0x18] sm:$0xff] %vm1386, %v1345
      %1391 = vst.msk [vmem:[#allocation3 + $0x20] sm:$0xff] %vm1386, %v1347
      %1392 = vst.msk [vmem:[#allocation3 + $0x28] sm:$0xff] %vm1386, %v1349
      %1393 = vst.msk [vmem:[#allocation3 + $0x30] sm:$0xff] %vm1386, %v1351
      %1394 = vst.msk [vmem:[#allocation3 + $0x38] sm:$0xff] %vm1386, %v1353
      %1395 = vst.msk [vmem:[#allocation3 + $0x40] sm:$0xff] %vm1386, %v1355
      %1396 = vst.msk [vmem:[#allocation3 + $0x48] sm:$0xff] %vm1386, %v1357
      %1397 = vst.msk [vmem:[#allocation3 + $0x50] sm:$0xff] %vm1386, %v1359
      %1398 = vst.msk [vmem:[#allocation3 + $0x58] sm:$0xff] %vm1386, %v1361
      %1399 = vst.msk [vmem:[#allocation3 + $0x60] sm:$0xff] %vm1386, %v1363
      %1400 = vst.msk [vmem:[#allocation3 + $0x68] sm:$0xff] %vm1386, %v1365
      %1401 = vst.msk [vmem:[#allocation3 + $0x70] sm:$0xff] %vm1386, %v1367
      %1402 = vst.msk [vmem:[#allocation3 + $0x78] sm:$0xff] %vm1386, %v1369
      %v1403 = vld [vmem:[#allocation3] sm:$0xff]
      %v1404 = vld [vmem:[#allocation3 + $0x8] sm:$0xff]
      %v1405 = vld [vmem:[#allocation3 + $0x10] sm:$0xff]
      %v1406 = vld [vmem:[#allocation3 + $0x18] sm:$0xff]
      %v1407 = vld [vmem:[#allocation3 + $0x20] sm:$0xff]
      %v1408 = vld [vmem:[#allocation3 + $0x28] sm:$0xff]
      %v1409 = vld [vmem:[#allocation3 + $0x30] sm:$0xff]
      %v1410 = vld [vmem:[#allocation3 + $0x38] sm:$0xff]
      %v1411 = vld [vmem:[#allocation3 + $0x40] sm:$0xff]
      %v1412 = vld [vmem:[#allocation3 + $0x48] sm:$0xff]
      %v1413 = vld [vmem:[#allocation3 + $0x50] sm:$0xff]
      %v1414 = vld [vmem:[#allocation3 + $0x58] sm:$0xff]
      %v1415 = vld [vmem:[#allocation3 + $0x60] sm:$0xff]
      %v1416 = vld [vmem:[#allocation3 + $0x68] sm:$0xff]
      %v1417 = vld [vmem:[#allocation3 + $0x70] sm:$0xff]
      %v1418 = vld [vmem:[#allocation3 + $0x78] sm:$0xff]
      %v1419 = vld [vmem:[%s1] sm:$0xf]
      %v1420 = vld [vmem:[%s1 + $0x4] sm:$0x1]
      %v1423 = vunpack.c.l.b16 %v1419
      %v1424 = vunpack.c.l.b16 %v1420
      %v1425 = vpack.c.b16 %v1424, %v1423
      %vm1426 = vcmask 72704
      %v1428 = vsel %vm1426, %v1403, 0
      %v1431 = vsel %vm1426, %v1404, 0
      %v1434 = vsel %vm1426, %v1405, 0
      %v1437 = vsel %vm1426, %v1406, 0
      %v1440 = vsel %vm1426, %v1407, 0
      %v1443 = vsel %vm1426, %v1408, 0
      %v1446 = vsel %vm1426, %v1409, 0
      %v1449 = vsel %vm1426, %v1410, 0
      %v1452 = vsel %vm1426, %v1411, 0
      %v1455 = vsel %vm1426, %v1412, 0
      %v1458 = vsel %vm1426, %v1413, 0
      %v1461 = vsel %vm1426, %v1414, 0
      %v1464 = vsel %vm1426, %v1415, 0
      %v1467 = vsel %vm1426, %v1416, 0
      %v1470 = vsel %vm1426, %v1417, 0
      %v1473 = vsel %vm1426, %v1418, 0
      %vm1475 = vcmask 1043456
      %vm1476 = vcmask 1044480
      %v1477 = vsel %vm1475, 4294967295, 65535
      %v1478 = vsel %vm1476, %v1477, 0
      %v1480 = vand.u32 %v1425, %v1478
      %1482 = vmatprep.subr.bf16.mxu0 0
      %1483 = vmatpush1.bf16.msra.mxu0 %v1480
      %1484 = vmatprep.subr.bf16.mxu0 0
      %1485 = vmatpush1.bf16.msra.mxu0 0
      %1486 = vmatprep.subr.bf16.mxu0 0
      %1487 = vmatpush1.bf16.msra.mxu0 0
      %1488 = vmatprep.subr.bf16.mxu0 0
      %1489 = vmatpush1.bf16.msra.mxu0 0
      %1490 = vmatprep.subr.bf16.mxu0 0
      %1491 = vmatpush1.bf16.msra.mxu0 0
      %1492 = vmatprep.subr.bf16.mxu0 0
      %1493 = vmatpush1.bf16.msra.mxu0 0
      %1494 = vmatprep.subr.bf16.mxu0 0
      %1495 = vmatpush1.bf16.msra.mxu0 0
      %1496 = vmatprep.subr.bf16.mxu0 0
      %1497 = vmatpush1.bf16.msra.mxu0 0
      %1498 = vmatprep.subr.bf16.mxu0 0
      %1499 = vmatpush1.bf16.msra.mxu0 0
      %1500 = vmatprep.subr.bf16.mxu0 0
      %1501 = vmatpush1.bf16.msra.mxu0 0
      %1502 = vmatprep.subr.bf16.mxu0 0
      %1503 = vmatpush1.bf16.msra.mxu0 0
      %1504 = vmatprep.subr.bf16.mxu0 0
      %1505 = vmatpush1.bf16.msra.mxu0 0
      %1506 = vmatprep.subr.bf16.mxu0 0
      %1507 = vmatpush1.bf16.msra.mxu0 0
      %1508 = vmatprep.subr.bf16.mxu0 0
      %1509 = vmatpush1.bf16.msra.mxu0 0
      %1510 = vmatprep.subr.bf16.mxu0 0
      %1511 = vmatpush1.bf16.msra.mxu0 0
      %1512 = vmatprep.subr.bf16.mxu0 0
      %1513 = vmatpush1.bf16.msra.mxu0 0
      %1514 = vmatprep.mubr.bf16.mxu0 0
      %1515 = vmatmul.mubr.bf16.gmra.mrb[0].mxu0 %v1428
      %v1516 = vpop.f32.mrb[0].mxu0
      %v1517 = vadd.f32 0.0, %v1516
      %v1518 = vpop.f32.mrb[0].mxu0
      %v1519 = vpop.f32.mrb[0].mxu0
      %v1520 = vadd.f32 0.0, %v1519
      %v1521 = vpop.f32.mrb[0].mxu0
      %1522 = vmatprep.mubr.bf16.mxu0 0
      %1523 = vmatmul.mubr.bf16.gmra.mrb[0].mxu0 %v1431
      %v1524 = vpop.f32.mrb[0].mxu0
      %v1525 = vadd.f32 0.0, %v1524
      %v1526 = vpop.f32.mrb[0].mxu0
      %v1527 = vpop.f32.mrb[0].mxu0
      %v1528 = vadd.f32 0.0, %v1527
      %v1529 = vpop.f32.mrb[0].mxu0
      %1530 = vmatprep.mubr.bf16.mxu0 0
      %1531 = vmatmul.mubr.bf16.gmra.mrb[0].mxu0 %v1434
      %v1532 = vpop.f32.mrb[0].mxu0
      %v1533 = vadd.f32 0.0, %v1532
      %v1534 = vpop.f32.mrb[0].mxu0
      %v1535 = vpop.f32.mrb[0].mxu0
      %v1536 = vadd.f32 0.0, %v1535
      %v1537 = vpop.f32.mrb[0].mxu0
      %1538 = vmatprep.mubr.bf16.mxu0 0
      %1539 = vmatmul.mubr.bf16.gmra.mrb[0].mxu0 %v1437
      %v1540 = vpop.f32.mrb[0].mxu0
      %v1541 = vadd.f32 0.0, %v1540
      %v1542 = vpop.f32.mrb[0].mxu0
      %v1543 = vpop.f32.mrb[0].mxu0
      %v1544 = vadd.f32 0.0, %v1543
      %v1545 = vpop.f32.mrb[0].mxu0
      %1546 = vmatprep.mubr.bf16.mxu0 0
      %1547 = vmatmul.mubr.bf16.gmra.mrb[0].mxu0 %v1440
      %v1548 = vpop.f32.mrb[0].mxu0
      %v1549 = vadd.f32 0.0, %v1548
      %v1550 = vpop.f32.mrb[0].mxu0
      %v1551 = vpop.f32.mrb[0].mxu0
      %v1552 = vadd.f32 0.0, %v1551
      %v1553 = vpop.f32.mrb[0].mxu0
      %1554 = vmatprep.mubr.bf16.mxu0 0
      %1555 = vmatmul.mubr.bf16.gmra.mrb[0].mxu0 %v1443
      %v1556 = vpop.f32.mrb[0].mxu0
      %v1557 = vadd.f32 0.0, %v1556
      %v1558 = vpop.f32.mrb[0].mxu0
      %v1559 = vpop.f32.mrb[0].mxu0
      %v1560 = vadd.f32 0.0, %v1559
      %v1561 = vpop.f32.mrb[0].mxu0
      %1562 = vmatprep.mubr.bf16.mxu0 0
      %1563 = vmatmul.mubr.bf16.gmra.mrb[0].mxu0 %v1446
      %v1564 = vpop.f32.mrb[0].mxu0
      %v1565 = vadd.f32 0.0, %v1564
      %v1566 = vpop.f32.mrb[0].mxu0
      %v1567 = vpop.f32.mrb[0].mxu0
      %v1568 = vadd.f32 0.0, %v1567
      %v1569 = vpop.f32.mrb[0].mxu0
      %1570 = vmatprep.mubr.bf16.mxu0 0
      %1571 = vmatmul.mubr.bf16.gmra.mrb[0].mxu0 %v1449
      %v1572 = vpop.f32.mrb[0].mxu0
      %v1573 = vadd.f32 0.0, %v1572
      %v1574 = vpop.f32.mrb[0].mxu0
      %v1575 = vpop.f32.mrb[0].mxu0
      %v1576 = vadd.f32 0.0, %v1575
      %v1577 = vpop.f32.mrb[0].mxu0
      %1578 = vmatprep.mubr.bf16.mxu0 0
      %1579 = vmatmul.mubr.bf16.gmra.mrb[0].mxu0 %v1452
      %v1580 = vpop.f32.mrb[0].mxu0
      %v1581 = vadd.f32 0.0, %v1580
      %v1582 = vpop.f32.mrb[0].mxu0
      %v1583 = vpop.f32.mrb[0].mxu0
      %v1584 = vadd.f32 0.0, %v1583
      %v1585 = vpop.f32.mrb[0].mxu0
      %1586 = vmatprep.mubr.bf16.mxu0 0
      %1587 = vmatmul.mubr.bf16.gmra.mrb[0].mxu0 %v1455
      %v1588 = vpop.f32.mrb[0].mxu0
      %v1589 = vadd.f32 0.0, %v1588
      %v1590 = vpop.f32.mrb[0].mxu0
      %v1591 = vpop.f32.mrb[0].mxu0
      %v1592 = vadd.f32 0.0, %v1591
      %v1593 = vpop.f32.mrb[0].mxu0
      %1594 = vmatprep.mubr.bf16.mxu0 0
      %1595 = vmatmul.mubr.bf16.gmra.mrb[0].mxu0 %v1458
      %v1596 = vpop.f32.mrb[0].mxu0
      %v1597 = vadd.f32 0.0, %v1596
      %v1598 = vpop.f32.mrb[0].mxu0
      %v1599 = vpop.f32.mrb[0].mxu0
      %v1600 = vadd.f32 0.0, %v1599
      %v1601 = vpop.f32.mrb[0].mxu0
      %1602 = vmatprep.mubr.bf16.mxu0 0
      %1603 = vmatmul.mubr.bf16.gmra.mrb[0].mxu0 %v1461
      %v1604 = vpop.f32.mrb[0].mxu0
      %v1605 = vadd.f32 0.0, %v1604
      %v1606 = vpop.f32.mrb[0].mxu0
      %v1607 = vpop.f32.mrb[0].mxu0
      %v1608 = vadd.f32 0.0, %v1607
      %v1609 = vpop.f32.mrb[0].mxu0
      %1610 = vmatprep.mubr.bf16.mxu0 0
      %1611 = vmatmul.mubr.bf16.gmra.mrb[0].mxu0 %v1464
      %v1612 = vpop.f32.mrb[0].mxu0
      %v1613 = vadd.f32 0.0, %v1612
      %v1614 = vpop.f32.mrb[0].mxu0
      %v1615 = vpop.f32.mrb[0].mxu0
      %v1616 = vadd.f32 0.0, %v1615
      %v1617 = vpop.f32.mrb[0].mxu0
      %1618 = vmatprep.mubr.bf16.mxu0 0
      %1619 = vmatmul.mubr.bf16.gmra.mrb[0].mxu0 %v1467
      %v1620 = vpop.f32.mrb[0].mxu0
      %v1621 = vadd.f32 0.0, %v1620
      %v1622 = vpop.f32.mrb[0].mxu0
      %v1623 = vpop.f32.mrb[0].mxu0
      %v1624 = vadd.f32 0.0, %v1623
      %v1625 = vpop.f32.mrb[0].mxu0
      %1626 = vmatprep.mubr.bf16.mxu0 0
      %1627 = vmatmul.mubr.bf16.gmra.mrb[0].mxu0 %v1470
      %v1628 = vpop.f32.mrb[0].mxu0
      %v1629 = vadd.f32 0.0, %v1628
      %v1630 = vpop.f32.mrb[0].mxu0
      %v1631 = vpop.f32.mrb[0].mxu0
      %v1632 = vadd.f32 0.0, %v1631
      %v1633 = vpop.f32.mrb[0].mxu0
      %1634 = vmatprep.mubr.bf16.mxu0 0
      %1635 = vmatmul.mubr.bf16.gmra.mrb[0].mxu0 %v1473
      %v1636 = vpop.f32.mrb[0].mxu0
      %v1637 = vadd.f32 0.0, %v1636
      %v1638 = vpop.f32.mrb[0].mxu0
      %v1639 = vpop.f32.mrb[0].mxu0
      %v1640 = vadd.f32 0.0, %v1639
      %v1641 = vpop.f32.mrb[0].mxu0
      %1642 = vdwg.mxu0
      %v1643 = vld [vmem:[%s2] sm:$0x1]
      %v1645 = vlaneseq
      %v1646 = vshrl.u32 %v1645, 7
      %v1647 = vsub.s32 0, %v1646
      %v1648 = vrot.slane %v1643, %v1647
      %v1650 = vmul.f32 %v1517, %v1648
      %v1651 = vmul.f32 %v1520, %v1648
      %v1652 = vmul.f32 %v1525, %v1648
      %v1653 = vmul.f32 %v1528, %v1648
      %v1654 = vmul.f32 %v1533, %v1648
      %v1655 = vmul.f32 %v1536, %v1648
      %v1656 = vmul.f32 %v1541, %v1648
      %v1657 = vmul.f32 %v1544, %v1648
      %v1658 = vmul.f32 %v1549, %v1648
      %v1659 = vmul.f32 %v1552, %v1648
      %v1660 = vmul.f32 %v1557, %v1648
      %v1661 = vmul.f32 %v1560, %v1648
      %v1662 = vmul.f32 %v1565, %v1648
      %v1663 = vmul.f32 %v1568, %v1648
      %v1664 = vmul.f32 %v1573, %v1648
      %v1665 = vmul.f32 %v1576, %v1648
      %v1666 = vmul.f32 %v1581, %v1648
      %v1667 = vmul.f32 %v1584, %v1648
      %v1668 = vmul.f32 %v1589, %v1648
      %v1669 = vmul.f32 %v1592, %v1648
      %v1670 = vmul.f32 %v1597, %v1648
      %v1671 = vmul.f32 %v1600, %v1648
      %v1672 = vmul.f32 %v1605, %v1648
      %v1673 = vmul.f32 %v1608, %v1648
      %v1674 = vmul.f32 %v1613, %v1648
      %v1675 = vmul.f32 %v1616, %v1648
      %v1676 = vmul.f32 %v1621, %v1648
      %v1677 = vmul.f32 %v1624, %v1648
      %v1678 = vmul.f32 %v1629, %v1648
      %v1679 = vmul.f32 %v1632, %v1648
      %v1680 = vmul.f32 %v1637, %v1648
      %v1681 = vmul.f32 %v1640, %v1648
      %v1682 = vld [vmem:[%s3] sm:$0x1]
      %v1684 = vlaneseq
      %v1685 = vshrl.u32 %v1684, 7
      %v1686 = vsub.s32 0, %v1685
      %v1687 = vrot.slane %v1682, %v1686
      %v1689 = vadd.f32 %v1650, %v1687
      %v1690 = vadd.f32 %v1651, %v1687
      %v1691 = vadd.f32 %v1652, %v1687
      %v1692 = vadd.f32 %v1653, %v1687
      %v1693 = vadd.f32 %v1654, %v1687
      %v1694 = vadd.f32 %v1655, %v1687
      %v1695 = vadd.f32 %v1656, %v1687
      %v1696 = vadd.f32 %v1657, %v1687
      %v1697 = vadd.f32 %v1658, %v1687
      %v1698 = vadd.f32 %v1659, %v1687
      %v1699 = vadd.f32 %v1660, %v1687
      %v1700 = vadd.f32 %v1661, %v1687
      %v1701 = vadd.f32 %v1662, %v1687
      %v1702 = vadd.f32 %v1663, %v1687
      %v1703 = vadd.f32 %v1664, %v1687
      %v1704 = vadd.f32 %v1665, %v1687
      %v1705 = vadd.f32 %v1666, %v1687
      %v1706 = vadd.f32 %v1667, %v1687
      %v1707 = vadd.f32 %v1668, %v1687
      %v1708 = vadd.f32 %v1669, %v1687
      %v1709 = vadd.f32 %v1670, %v1687
      %v1710 = vadd.f32 %v1671, %v1687
      %v1711 = vadd.f32 %v1672, %v1687
      %v1712 = vadd.f32 %v1673, %v1687
      %v1713 = vadd.f32 %v1674, %v1687
      %v1714 = vadd.f32 %v1675, %v1687
      %v1715 = vadd.f32 %v1676, %v1687
      %v1716 = vadd.f32 %v1677, %v1687
      %v1717 = vadd.f32 %v1678, %v1687
      %v1718 = vadd.f32 %v1679, %v1687
      %v1719 = vadd.f32 %v1680, %v1687
      %v1720 = vadd.f32 %v1681, %v1687
      %v1721 = vmax.f32 %v1689, 0.0
      %v1722 = vmax.f32 %v1690, 0.0
      %v1723 = vmax.f32 %v1691, 0.0
      %v1724 = vmax.f32 %v1692, 0.0
      %v1725 = vmax.f32 %v1693, 0.0
      %v1726 = vmax.f32 %v1694, 0.0
      %v1727 = vmax.f32 %v1695, 0.0
      %v1728 = vmax.f32 %v1696, 0.0
      %v1729 = vmax.f32 %v1697, 0.0
      %v1730 = vmax.f32 %v1698, 0.0
      %v1731 = vmax.f32 %v1699, 0.0
      %v1732 = vmax.f32 %v1700, 0.0
      %v1733 = vmax.f32 %v1701, 0.0
      %v1734 = vmax.f32 %v1702, 0.0
      %v1735 = vmax.f32 %v1703, 0.0
      %v1736 = vmax.f32 %v1704, 0.0
      %v1737 = vmax.f32 %v1705, 0.0
      %v1738 = vmax.f32 %v1706, 0.0
      %v1739 = vmax.f32 %v1707, 0.0
      %v1740 = vmax.f32 %v1708, 0.0
      %v1741 = vmax.f32 %v1709, 0.0
      %v1742 = vmax.f32 %v1710, 0.0
      %v1743 = vmax.f32 %v1711, 0.0
      %v1744 = vmax.f32 %v1712, 0.0
      %v1745 = vmax.f32 %v1713, 0.0
      %v1746 = vmax.f32 %v1714, 0.0
      %v1747 = vmax.f32 %v1715, 0.0
      %v1748 = vmax.f32 %v1716, 0.0
      %v1749 = vmax.f32 %v1717, 0.0
      %v1750 = vmax.f32 %v1718, 0.0
      %v1751 = vmax.f32 %v1719, 0.0
      %v1752 = vmax.f32 %v1720, 0.0
      %v1753 = vmin.f32 %v1721, 6.0
      %v1754 = vmin.f32 %v1722, 6.0
      %v1755 = vmin.f32 %v1723, 6.0
      %v1756 = vmin.f32 %v1724, 6.0
      %v1757 = vmin.f32 %v1725, 6.0
      %v1758 = vmin.f32 %v1726, 6.0
      %v1759 = vmin.f32 %v1727, 6.0
      %v1760 = vmin.f32 %v1728, 6.0
      %v1761 = vmin.f32 %v1729, 6.0
      %v1762 = vmin.f32 %v1730, 6.0
      %v1763 = vmin.f32 %v1731, 6.0
      %v1764 = vmin.f32 %v1732, 6.0
      %v1765 = vmin.f32 %v1733, 6.0
      %v1766 = vmin.f32 %v1734, 6.0
      %v1767 = vmin.f32 %v1735, 6.0
      %v1768 = vmin.f32 %v1736, 6.0
      %v1769 = vmin.f32 %v1737, 6.0
      %v1770 = vmin.f32 %v1738, 6.0
      %v1771 = vmin.f32 %v1739, 6.0
      %v1772 = vmin.f32 %v1740, 6.0
      %v1773 = vmin.f32 %v1741, 6.0
      %v1774 = vmin.f32 %v1742, 6.0
      %v1775 = vmin.f32 %v1743, 6.0
      %v1776 = vmin.f32 %v1744, 6.0
      %v1777 = vmin.f32 %v1745, 6.0
      %v1778 = vmin.f32 %v1746, 6.0
      %v1779 = vmin.f32 %v1747, 6.0
      %v1780 = vmin.f32 %v1748, 6.0
      %v1781 = vmin.f32 %v1749, 6.0
      %v1782 = vmin.f32 %v1750, 6.0
      %v1783 = vmin.f32 %v1751, 6.0
      %v1784 = vmin.f32 %v1752, 6.0
      %vm1785 = vcmask 64512
      %1786 = vst.msk [vmem:[%s197] sm:$0xff] %vm1785, %v1753
      %1787 = vst.msk [vmem:[%s197 + $0x8] sm:$0xff] %vm1785, %v1754
      %1788 = vst.msk [vmem:[%s197 + $0x10] sm:$0xff] %vm1785, %v1755
      %1789 = vst.msk [vmem:[%s197 + $0x18] sm:$0xff] %vm1785, %v1756
      %1790 = vst.msk [vmem:[%s197 + $0x20] sm:$0xff] %vm1785, %v1757
      %1791 = vst.msk [vmem:[%s197 + $0x28] sm:$0xff] %vm1785, %v1758
      %1792 = vst.msk [vmem:[%s197 + $0x30] sm:$0xff] %vm1785, %v1759
      %1793 = vst.msk [vmem:[%s197 + $0x38] sm:$0xff] %vm1785, %v1760
      %1794 = vst.msk [vmem:[%s197 + $0x40] sm:$0xff] %vm1785, %v1761
      %1795 = vst.msk [vmem:[%s197 + $0x48] sm:$0xff] %vm1785, %v1762
      %1796 = vst.msk [vmem:[%s197 + $0x50] sm:$0xff] %vm1785, %v1763
      %1797 = vst.msk [vmem:[%s197 + $0x58] sm:$0xff] %vm1785, %v1764
      %1798 = vst.msk [vmem:[%s197 + $0x60] sm:$0xff] %vm1785, %v1765
      %1799 = vst.msk [vmem:[%s197 + $0x68] sm:$0xff] %vm1785, %v1766
      %1800 = vst.msk [vmem:[%s197 + $0x70] sm:$0xff] %vm1785, %v1767
      %1801 = vst.msk [vmem:[%s197 + $0x78] sm:$0xff] %vm1785, %v1768
      %1802 = vst.msk [vmem:[%s197 + $0x80] sm:$0xff] %vm1785, %v1769
      %1803 = vst.msk [vmem:[%s197 + $0x88] sm:$0xff] %vm1785, %v1770
      %1804 = vst.msk [vmem:[%s197 + $0x90] sm:$0xff] %vm1785, %v1771
      %1805 = vst.msk [vmem:[%s197 + $0x98] sm:$0xff] %vm1785, %v1772
      %1806 = vst.msk [vmem:[%s197 + $0xa0] sm:$0xff] %vm1785, %v1773
      %1807 = vst.msk [vmem:[%s197 + $0xa8] sm:$0xff] %vm1785, %v1774
      %1808 = vst.msk [vmem:[%s197 + $0xb0] sm:$0xff] %vm1785, %v1775
      %1809 = vst.msk [vmem:[%s197 + $0xb8] sm:$0xff] %vm1785, %v1776
      %1810 = vst.msk [vmem:[%s197 + $0xc0] sm:$0xff] %vm1785, %v1777
      %1811 = vst.msk [vmem:[%s197 + $0xc8] sm:$0xff] %vm1785, %v1778
      %1812 = vst.msk [vmem:[%s197 + $0xd0] sm:$0xff] %vm1785, %v1779
      %1813 = vst.msk [vmem:[%s197 + $0xd8] sm:$0xff] %vm1785, %v1780
      %1814 = vst.msk [vmem:[%s197 + $0xe0] sm:$0xff] %vm1785, %v1781
      %1815 = vst.msk [vmem:[%s197 + $0xe8] sm:$0xff] %vm1785, %v1782
      %1816 = vst.msk [vmem:[%s197 + $0xf0] sm:$0xff] %vm1785, %v1783
      %1817 = vst.msk [vmem:[%s197 + $0xf8] sm:$0xff] %vm1785, %v1784
      %p1818 = scmp.lt.s32.totalorder %s15, 1
      %s1819 = scalar_select %p1818, %s15, 1
      %s1820 = smul.addr %s1819, 32
      %s1821 = smul.addr %s1820, 8
      %s1822 = scalar_lea.vmem %s4, %s1821
      // Predicated region
      $region37: #{tpu_custom_call.1} parent=35 // pred_check
        %p1823 = pneg %p122
      $region38: #{tpu_custom_call.1} parent=35 // pred_check_branch
        %1825 = sbr.rel (%p1823) target = $region40
      $region39: #{tpu_custom_call.1} parent=35 // pred_region
        _
      $region40: #{tpu_custom_call.1} parent=35 // pred_fallthru
        _
    $region36: #{tpu_custom_call.1} parent=5 // pred_fallthru
      _
    %p1826 = scmp.le.s32.totalorder 2, %s10
    // Predicated region
    $region41: #{tpu_custom_call.1} parent=5 // pred_check
      %p1827 = pneg %p1826
    $region42: #{tpu_custom_call.1} parent=5 // pred_check_branch
      %1829 = sbr.rel (%p1827) target = $region44
    $region43: #{tpu_custom_call.1} parent=5 // pred_region
      %s1830 = ssub.s32 %s10, 2
      // Predicated region
      $region45: #{tpu_custom_call.1} parent=43 // pred_check
        %p1831 = pneg %p128
      $region46: #{tpu_custom_call.1} parent=43 // pred_check_branch
        %1833 = sbr.rel (%p1831) target = $region48
      $region47: #{tpu_custom_call.1} parent=43 // pred_region
        %p1834 = scmp.lt.s32.totalorder %s16, 1
        %s1835 = scalar_select %p1834, %s16, 1
        %s1836 = smul.addr %s1835, 32
        %s1837 = smul.addr %s1836, 8
        %s1838 = scalar_lea.vmem %s4, %s1837
      $region48: #{tpu_custom_call.1} parent=43 // pred_fallthru
        _
    $region44: #{tpu_custom_call.1} parent=5 // pred_fallthru
      _
  $region6: #{tpu_custom_call.1} parent=0 // loop_footer
    %s14 = sadd.s32 1, %s10
  $region7: #{tpu_custom_call.1} parent=0 // loop_footer_branch
    %9 = sbr.rel target = $region3
  $region8: #{tpu_custom_call.1} parent=0 // loop_exit
    _

</llo_original>
